<compile_context>
chip_gen: v7x
topology: tpu7x:2x2x1
jax: 0.10.0
libtpu: 0.0.40
codegen_flags: <defaults>
</compile_context>

<pallas_src>
import jax
import jax.numpy as jnp
from jax import lax
from jax.experimental import pallas as pl
from jax.experimental.pallas import tpu as pltpu

# ----------------- small synthetic config -----------------
B, L, C = 2, 8, 4                       # batch, seq length, chars/word
WORD_VOCAB, CHAR_VOCAB, POS_VOCAB = 50, 20, 10
WORD_DIM, CHAR_DIM, POS_DIM = 32, 16, 16
ENC_IN = WORD_DIM + CHAR_DIM + POS_DIM  # 64
HIDDEN = 64
ARC_DIM, REL_DIM, N_RELS = 32, 16, 8
PROJ_DIM = 2 * ARC_DIM + 2 * REL_DIM    # 96
UNK_WORD, UNK_CHAR, UNK_POS = 1, 1, 1


# ===================== the fused parser kernel =====================

def _parser_kernel(x_ref, mask_ref, enc_w_ref, enc_b_ref,
                   proj_w_ref, proj_b_ref, arc_w_ref, arc_u_ref,
                   rel_u_ref, rel_wd_ref, rel_wh_ref, rel_b_ref,
                   arcs_ref, rels_ref):
    """Per batch element: encoder + fused projections + arc & rel biaffines."""
    x = x_ref[0]            # [L, ENC_IN]
    msk = mask_ref[0]       # [1, L]   (head/column mask)

    # TODO(synk): BiLSTM encoder of BiaffineAttnParser replaced by a single
    # fused tanh projection (recurrence not ported to Pallas).
    h = jnp.tanh(jnp.dot(x, enc_w_ref[...],
                         preferred_element_type=jnp.float32) + enc_b_ref[...])

    # all four arc/rel dep/head MLP projections fused into one 96-lane matmul
    y = jnp.maximum(
        jnp.dot(h, proj_w_ref[...], preferred_element_type=jnp.float32)
        + proj_b_ref[...], 0.0)                                   # [L, 96]

    a_dep = y[:, :ARC_DIM]
    a_head = y[:, ARC_DIM:2 * ARC_DIM]
    r_dep = y[:, 2 * ARC_DIM:2 * ARC_DIM + REL_DIM]
    r_head = y[:, 2 * ARC_DIM + REL_DIM:]

    dn_ABt = (((1,), (1,)), ((), ()))   # contract dim 1 of both: A @ B^T on MXU

    # ---- arc biaffine + fused head mask ----
    tmp = jnp.dot(a_dep, arc_w_ref[...], preferred_element_type=jnp.float32)
    s_arc = lax.dot_general(tmp, a_head, dn_ABt,
                            preferred_element_type=jnp.float32)   # [L, L]
    hb = lax.dot_general(arc_u_ref[...], a_head, dn_ABt,
                         preferred_element_type=jnp.float32)      # [1, L]
    arcs_ref[0] = s_arc + hb + (1.0 - msk) * jnp.float32(-1e9)

    # ---- relation biaffine: all R relations via one lane-dense matmul ----
    t = jnp.dot(r_dep, rel_u_ref[...],
                preferred_element_type=jnp.float32)               # [L, R*Dr] = [8, 128]
    sd = lax.dot_general(r_dep, rel_wd_ref[...], dn_ABt,
                         preferred_element_type=jnp.float32)      # [L, R]
    sd = sd + rel_b_ref[...]                                      # fused per-rel bias
    sh = lax.dot_general(rel_wh_ref[...], r_head, dn_ABt,
                         preferred_element_type=jnp.float32)      # [R, L]
    for r in range(N_RELS):                                       # unrolled, in-VMEM
        tr = t[:, r * REL_DIM:(r + 1) * REL_DIM]                  # [L, Dr]
        s_r = lax.dot_general(tr, r_head, dn_ABt,
                              preferred_element_type=jnp.float32) # [L, L]
        rels_ref[0, r] = s_r + sd[:, r:r + 1] + sh[r:r + 1, :]


def biaffine_parser(p, word, char, pos, mask):
    """Runs on the stacked (obfuscated ++ original) batch in one pallas_call."""
    Bs, Ls = word.shape

    # TODO(synk): embedding gathers / char max-pool kept as XLA glue
    # (data-dependent gather of tiny tables not ported into the kernel).
    w_e = jnp.take(p["word_emb"], word, axis=0)                   # [Bs, L, Dw]
    c_e = jnp.max(jnp.take(p["char_emb"], char, axis=0), axis=2)  # char pool
    p_e = jnp.take(p["pos_emb"], pos, axis=0)                     # [Bs, L, Dp]
    x = jnp.concatenate([w_e, c_e, p_e], axis=-1) * mask[:, :, None]
    mask3 = mask[:, None, :]                                      # [Bs, 1, L]

    def full(a):
        nd = a.ndim
        return pl.BlockSpec(a.shape, lambda b, nd=nd: (0,) * nd)

    weights = (p["enc_w"], p["enc_b"], p["proj_w"], p["proj_b"],
               p["arc_W"], p["arc_u_row"],
               p["rel_U_all"], p["rel_wd"], p["rel_wh"], p["rel_b_row"])

    arcs, rels = pl.pallas_call(
        _parser_kernel,
        out_shape=(jax.ShapeDtypeStruct((Bs, Ls, Ls), jnp.float32),
                   jax.ShapeDtypeStruct((Bs, N_RELS, Ls, Ls), jnp.float32)),
        grid=(Bs,),
        in_specs=[pl.BlockSpec((1, Ls, ENC_IN), lambda b: (b, 0, 0)),
                  pl.BlockSpec((1, 1, Ls), lambda b: (b, 0, 0))]
                 + [full(w) for w in weights],
        out_specs=(pl.BlockSpec((1, Ls, Ls), lambda b: (b, 0, 0)),
                   pl.BlockSpec((1, N_RELS, Ls, Ls), lambda b: (b, 0, 0, 0))),
        compiler_params=pltpu.CompilerParams(
            dimension_semantics=("parallel",)),      # megacore over batch
    )(x, mask3, *weights)

    rels = jnp.transpose(rels, (0, 2, 3, 1))         # [Bs, L, L, R] final layout
    return {"arcs": arcs, "rels": rels}


# ===================== parameters (deterministic, no checkpoint) =====================

def init_params(key):
    ks = jax.random.split(key, 14)

    def nrm(k, shape, scale=0.1):
        return (scale * jax.random.normal(k, shape)).astype(jnp.float32)

    arc_dep_w = nrm(ks[4], (HIDDEN, ARC_DIM))
    arc_head_w = nrm(ks[5], (HIDDEN, ARC_DIM))
    rel_dep_w = nrm(ks[6], (HIDDEN, REL_DIM))
    rel_head_w = nrm(ks[7], (HIDDEN, REL_DIM))
    rel_U = nrm(ks[10], (N_RELS, REL_DIM, REL_DIM))
    rel_wd = nrm(ks[11], (N_RELS, 1, REL_DIM))
    rel_wh = nrm(ks[12], (N_RELS, 1, REL_DIM))

    p = {
        "word_emb": nrm(ks[0], (WORD_VOCAB, WORD_DIM)),
        "char_emb": nrm(ks[1], (CHAR_VOCAB, CHAR_DIM)),
        "pos_emb":  nrm(ks[2], (POS_VOCAB, POS_DIM)),
        "enc_w": nrm(ks[3], (ENC_IN, HIDDEN)),
        "enc_b": jnp.zeros((1, HIDDEN), jnp.float32),
        # the 4 arc/rel MLP projections fused into one [HIDDEN, 96] matmul
        "proj_w": jnp.concatenate(
            [arc_dep_w, arc_head_w, rel_dep_w, rel_head_w], axis=1),
        "proj_b": jnp.zeros((1, PROJ_DIM), jnp.float32),
        "arc_W": nrm(ks[8], (ARC_DIM, ARC_DIM)),
        "arc_u_row": nrm(ks[9], (ARC_DIM, 1)).reshape(1, ARC_DIM),
        # rel_U rearranged to a lane-dense [REL_DIM, N_RELS*REL_DIM] = [16, 128]
        "rel_U_all": jnp.transpose(rel_U, (1, 0, 2)).reshape(
            REL_DIM, N_RELS * REL_DIM),
        "rel_wd": rel_wd[:, 0, :],                   # [R, REL_DIM]
        "rel_wh": rel_wh[:, 0, :],                   # [R, REL_DIM]
        "rel_b_row": nrm(ks[13], (N_RELS,)).reshape(1, N_RELS),
    }
    # TODO(synk): keywords come from get_word_ids(train_path) in the original;
    # here a deterministic in-script keyword set (word ids 5..14) is used.
    p["kw_table"] = jnp.zeros((WORD_VOCAB,), jnp.int32).at[5:15].set(1)
    return p


# ===================== model (glue + kernel) =====================

def unk_generator(p, word, char, pos):
    # tiny elementwise selects: plain jnp glue (XLA fuses with the gathers).
    kw_flag = jnp.take(p["kw_table"], word, axis=0).astype(jnp.int32)   # [B, L]
    is_kw = kw_flag > 0
    obf_word = jnp.where(is_kw, jnp.int32(UNK_WORD), word)
    obf_pos = jnp.where(is_kw, jnp.int32(UNK_POS), pos)
    obf_char = jnp.where(is_kw[:, :, None], jnp.int32(UNK_CHAR), char)
    return {"obf_word": obf_word, "obf_char": obf_char,
            "obf_pos": obf_pos, "obf_mask": kw_flag}


def unk_obfuscator_forward(p, word, char, pos, mask, length):
    del length  # kept for signature parity with the PyTorch module
    Bs = word.shape[0]
    gen = unk_generator(p, word, char, pos)

    # run the shared parser ONCE on the stacked (obfuscated ++ original) batch
    word_s = jnp.concatenate([gen["obf_word"], word], axis=0)
    char_s = jnp.concatenate([gen["obf_char"], char], axis=0)
    pos_s = jnp.concatenate([gen["obf_pos"], pos], axis=0)
    mask_s = jnp.concatenate([mask, mask], axis=0)
    prd = biaffine_parser(p, word_s, char_s, pos_s, mask_s)

    return {
        "gen_oup": gen,
        "obf_word": gen["obf_word"], "obf_char": gen["obf_char"],
        "obf_pos": gen["obf_pos"], "obf_mask": gen["obf_mask"],
        "obf_arcs": prd["arcs"][:Bs], "obf_rels": prd["rels"][:Bs],
        "ori_arcs": prd["arcs"][Bs:], "ori_rels": prd["rels"][Bs:],
    }


# ===================== main =====================

if __name__ == "__main__":
    key = jax.random.PRNGKey(0)
    kw, kc, kp = jax.random.split(key, 3)
    word = jax.random.randint(kw, (B, L), 2, WORD_VOCAB, dtype=jnp.int32)
    char = jax.random.randint(kc, (B, L, C), 2, CHAR_VOCAB, dtype=jnp.int32)
    pos = jax.random.randint(kp, (B, L), 2, POS_VOCAB, dtype=jnp.int32)
    length = jnp.array([L, L - 2], dtype=jnp.int32)
    mask = (jnp.arange(L)[None, :] < length[:, None]).astype(jnp.float32)

    params = init_params(jax.random.PRNGKey(42))
    fwd = jax.jit(unk_obfuscator_forward)
    out = fwd(params, word, char, pos, mask, length)
    out = jax.tree_util.tree_map(jax.block_until_ready, out)

    assert out["obf_word"].shape == (B, L)
    assert out["obf_char"].shape == (B, L, C)
    assert out["obf_mask"].shape == (B, L)
    assert out["obf_arcs"].shape == (B, L, L)
    assert out["obf_rels"].shape == (B, L, L, N_RELS)
    assert out["ori_arcs"].shape == (B, L, L)
    assert out["ori_rels"].shape == (B, L, L, N_RELS)
    print("KERNEL_OK")
</pallas_src>

<mosaic_0001>
module attributes {stable_mosaic.version = 11 : i64} {
  func.func @_parser_kernel(%arg0: i32, %arg1: memref<1x8x64xf32, #tpu.memory_space<vmem>>, %arg2: memref<1x1x8xf32, #tpu.memory_space<vmem>>, %arg3: memref<64x64xf32, #tpu.memory_space<vmem>>, %arg4: memref<1x64xf32, #tpu.memory_space<vmem>>, %arg5: memref<64x96xf32, #tpu.memory_space<vmem>>, %arg6: memref<1x96xf32, #tpu.memory_space<vmem>>, %arg7: memref<32x32xf32, #tpu.memory_space<vmem>>, %arg8: memref<1x32xf32, #tpu.memory_space<vmem>>, %arg9: memref<16x128xf32, #tpu.memory_space<vmem>>, %arg10: memref<8x16xf32, #tpu.memory_space<vmem>>, %arg11: memref<8x16xf32, #tpu.memory_space<vmem>>, %arg12: memref<1x8xf32, #tpu.memory_space<vmem>>, %arg13: memref<1x8x8xf32, #tpu.memory_space<vmem>>, %arg14: memref<1x8x8x8xf32, #tpu.memory_space<vmem>>) attributes {dimension_semantics = [#tpu.dimension_semantics<parallel>], iteration_bounds = array<i64: 4>, scalar_prefetch = 0 : i64, scratch_operands = 0 : i64, tpu.core_type = #tpu.core_type<tc>, window_params = [{transform_indices = @transform_0, window_bounds = array<i64: 1, 8, 64>}, {transform_indices = @transform_1, window_bounds = array<i64: 1, 1, 8>}, {pipeline_mode = #tpu.pipeline_mode<synchronous>, transform_indices = @transform_2, window_bounds = array<i64: 64, 64>}, {pipeline_mode = #tpu.pipeline_mode<synchronous>, transform_indices = @transform_3, window_bounds = array<i64: 1, 64>}, {pipeline_mode = #tpu.pipeline_mode<synchronous>, transform_indices = @transform_4, window_bounds = array<i64: 64, 96>}, {pipeline_mode = #tpu.pipeline_mode<synchronous>, transform_indices = @transform_5, window_bounds = array<i64: 1, 96>}, {pipeline_mode = #tpu.pipeline_mode<synchronous>, transform_indices = @transform_6, window_bounds = array<i64: 32, 32>}, {pipeline_mode = #tpu.pipeline_mode<synchronous>, transform_indices = @transform_7, window_bounds = array<i64: 1, 32>}, {pipeline_mode = #tpu.pipeline_mode<synchronous>, transform_indices = @transform_8, window_bounds = array<i64: 16, 128>}, {pipeline_mode = #tpu.pipeline_mode<synchronous>, transform_indices = @transform_9, window_bounds = array<i64: 8, 16>}, {pipeline_mode = #tpu.pipeline_mode<synchronous>, transform_indices = @transform_10, window_bounds = array<i64: 8, 16>}, {pipeline_mode = #tpu.pipeline_mode<synchronous>, transform_indices = @transform_11, window_bounds = array<i64: 1, 8>}, {transform_indices = @transform_12, window_bounds = array<i64: 1, 8, 8>}, {transform_indices = @transform_13, window_bounds = array<i64: 1, 8, 8, 8>}]} {
    %c0 = arith.constant 0 : index
    %c0_0 = arith.constant 0 : index
    %c0_1 = arith.constant 0 : index
    %0 = vector.load %arg1[%c0, %c0_0, %c0_1] : memref<1x8x64xf32, #tpu.memory_space<vmem>>, vector<1x8x64xf32>
    %1 = vector.shape_cast %0 : vector<1x8x64xf32> to vector<8x64xf32>
    %c0_2 = arith.constant 0 : index
    %c0_3 = arith.constant 0 : index
    %c0_4 = arith.constant 0 : index
    %2 = vector.load %arg2[%c0_2, %c0_3, %c0_4] : memref<1x1x8xf32, #tpu.memory_space<vmem>>, vector<1x1x8xf32>
    %3 = vector.shape_cast %2 : vector<1x1x8xf32> to vector<1x8xf32>
    %c0_5 = arith.constant 0 : index
    %c0_6 = arith.constant 0 : index
    %4 = vector.load %arg3[%c0_5, %c0_6] : memref<64x64xf32, #tpu.memory_space<vmem>>, vector<64x64xf32>
    %cst = arith.constant dense<0.000000e+00> : vector<8x64xf32>
    %5 = tpu.matmul %1, %4, %cst {dimension_numbers = #tpu.dot_dimension_numbers<[1], [0], [0], [1], [0, 0, 1, 1], [], []>} : vector<8x64xf32>, vector<64x64xf32>, vector<8x64xf32> -> vector<8x64xf32>
    %c0_7 = arith.constant 0 : index
    %c0_8 = arith.constant 0 : index
    %6 = vector.load %arg4[%c0_7, %c0_8] : memref<1x64xf32, #tpu.memory_space<vmem>>, vector<1x64xf32>
    %7 = vector.broadcast %6 : vector<1x64xf32> to vector<8x64xf32>
    %8 = arith.addf %5, %7 : vector<8x64xf32>
    %9 = math.tanh %8 : vector<8x64xf32>
    %c0_9 = arith.constant 0 : index
    %c0_10 = arith.constant 0 : index
    %10 = vector.load %arg5[%c0_9, %c0_10] : memref<64x96xf32, #tpu.memory_space<vmem>>, vector<64x96xf32>
    %cst_11 = arith.constant dense<0.000000e+00> : vector<8x96xf32>
    %11 = tpu.matmul %9, %10, %cst_11 {dimension_numbers = #tpu.dot_dimension_numbers<[1], [0], [0], [1], [0, 0, 1, 1], [], []>} : vector<8x64xf32>, vector<64x96xf32>, vector<8x96xf32> -> vector<8x96xf32>
    %c0_12 = arith.constant 0 : index
    %c0_13 = arith.constant 0 : index
    %12 = vector.load %arg6[%c0_12, %c0_13] : memref<1x96xf32, #tpu.memory_space<vmem>>, vector<1x96xf32>
    %13 = vector.broadcast %12 : vector<1x96xf32> to vector<8x96xf32>
    %14 = arith.addf %11, %13 : vector<8x96xf32>
    %cst_14 = arith.constant 0.000000e+00 : f32
    %15 = vector.broadcast %cst_14 : f32 to vector<8x96xf32>
    %16 = arith.maximumf %14, %15 : vector<8x96xf32>
    %17 = vector.extract_strided_slice %16 {offsets = [0, 0], sizes = [8, 32], strides = [1, 1]} : vector<8x96xf32> to vector<8x32xf32>
    %18 = vector.extract_strided_slice %16 {offsets = [0, 32], sizes = [8, 32], strides = [1, 1]} : vector<8x96xf32> to vector<8x32xf32>
    %19 = vector.extract_strided_slice %16 {offsets = [0, 64], sizes = [8, 16], strides = [1, 1]} : vector<8x96xf32> to vector<8x16xf32>
    %20 = vector.extract_strided_slice %16 {offsets = [0, 80], sizes = [8, 16], strides = [1, 1]} : vector<8x96xf32> to vector<8x16xf32>
    %c0_15 = arith.constant 0 : index
    %c0_16 = arith.constant 0 : index
    %21 = vector.load %arg7[%c0_15, %c0_16] : memref<32x32xf32, #tpu.memory_space<vmem>>, vector<32x32xf32>
    %cst_17 = arith.constant dense<0.000000e+00> : vector<8x32xf32>
    %22 = tpu.matmul %17, %21, %cst_17 {dimension_numbers = #tpu.dot_dimension_numbers<[1], [0], [0], [1], [0, 0, 1, 1], [], []>} : vector<8x32xf32>, vector<32x32xf32>, vector<8x32xf32> -> vector<8x32xf32>
    %cst_18 = arith.constant dense<0.000000e+00> : vector<8x8xf32>
    %23 = tpu.matmul %22, %18, %cst_18 {dimension_numbers = #tpu.dot_dimension_numbers<[1], [1], [0], [0], [0, 0, 1, 0], [], []>} : vector<8x32xf32>, vector<8x32xf32>, vector<8x8xf32> -> vector<8x8xf32>
    %c0_19 = arith.constant 0 : index
    %c0_20 = arith.constant 0 : index
    %24 = vector.load %arg8[%c0_19, %c0_20] : memref<1x32xf32, #tpu.memory_space<vmem>>, vector<1x32xf32>
    %cst_21 = arith.constant dense<0.000000e+00> : vector<1x8xf32>
    %25 = tpu.matmul %24, %18, %cst_21 {dimension_numbers = #tpu.dot_dimension_numbers<[1], [1], [0], [0], [0, 0, 1, 0], [], []>} : vector<1x32xf32>, vector<8x32xf32>, vector<1x8xf32> -> vector<1x8xf32>
    %26 = vector.broadcast %25 : vector<1x8xf32> to vector<8x8xf32>
    %27 = arith.addf %23, %26 : vector<8x8xf32>
    %cst_22 = arith.constant 1.000000e+00 : f32
    %28 = vector.broadcast %cst_22 : f32 to vector<1x8xf32>
    %29 = arith.subf %28, %3 : vector<1x8xf32>
    %cst_23 = arith.constant -1.000000e+09 : f32
    %30 = vector.broadcast %cst_23 : f32 to vector<1x8xf32>
    %31 = arith.mulf %29, %30 : vector<1x8xf32>
    %32 = vector.broadcast %31 : vector<1x8xf32> to vector<8x8xf32>
    %33 = arith.addf %27, %32 : vector<8x8xf32>
    %c0_24 = arith.constant 0 : index
    %c0_25 = arith.constant 0 : index
    %c0_26 = arith.constant 0 : index
    %34 = vector.load %arg13[%c0_24, %c0_25, %c0_26] : memref<1x8x8xf32, #tpu.memory_space<vmem>>, vector<1x8x8xf32>
    %35 = vector.shape_cast %34 : vector<1x8x8xf32> to vector<8x8xf32>
    %36 = vector.shape_cast %33 : vector<8x8xf32> to vector<1x8x8xf32>
    tpu.vector_store %arg13[%c0_24, %c0_25, %c0_26], %36 {strides = array<i32>} : memref<1x8x8xf32, #tpu.memory_space<vmem>>, vector<1x8x8xf32>,
    %c0_27 = arith.constant 0 : index
    %c0_28 = arith.constant 0 : index
    %37 = vector.load %arg9[%c0_27, %c0_28] : memref<16x128xf32, #tpu.memory_space<vmem>>, vector<16x128xf32>
    %cst_29 = arith.constant dense<0.000000e+00> : vector<8x128xf32>
    %38 = tpu.matmul %19, %37, %cst_29 {dimension_numbers = #tpu.dot_dimension_numbers<[1], [0], [0], [1], [0, 0, 1, 1], [], []>} : vector<8x16xf32>, vector<16x128xf32>, vector<8x128xf32> -> vector<8x128xf32>
    %c0_30 = arith.constant 0 : index
    %c0_31 = arith.constant 0 : index
    %39 = vector.load %arg10[%c0_30, %c0_31] : memref<8x16xf32, #tpu.memory_space<vmem>>, vector<8x16xf32>
    %cst_32 = arith.constant dense<0.000000e+00> : vector<8x8xf32>
    %40 = tpu.matmul %19, %39, %cst_32 {dimension_numbers = #tpu.dot_dimension_numbers<[1], [1], [0], [0], [0, 0, 1, 0], [], []>} : vector<8x16xf32>, vector<8x16xf32>, vector<8x8xf32> -> vector<8x8xf32>
    %c0_33 = arith.constant 0 : index
    %c0_34 = arith.constant 0 : index
    %41 = vector.load %arg12[%c0_33, %c0_34] : memref<1x8xf32, #tpu.memory_space<vmem>>, vector<1x8xf32>
    %42 = vector.broadcast %41 : vector<1x8xf32> to vector<8x8xf32>
    %43 = arith.addf %40, %42 : vector<8x8xf32>
    %c0_35 = arith.constant 0 : index
    %c0_36 = arith.constant 0 : index
    %44 = vector.load %arg11[%c0_35, %c0_36] : memref<8x16xf32, #tpu.memory_space<vmem>>, vector<8x16xf32>
    %cst_37 = arith.constant dense<0.000000e+00> : vector<8x8xf32>
    %45 = tpu.matmul %44, %20, %cst_37 {dimension_numbers = #tpu.dot_dimension_numbers<[1], [1], [0], [0], [0, 0, 1, 0], [], []>} : vector<8x16xf32>, vector<8x16xf32>, vector<8x8xf32> -> vector<8x8xf32>
    %46 = vector.extract_strided_slice %38 {offsets = [0, 0], sizes = [8, 16], strides = [1, 1]} : vector<8x128xf32> to vector<8x16xf32>
    %cst_38 = arith.constant dense<0.000000e+00> : vector<8x8xf32>
    %47 = tpu.matmul %46, %20, %cst_38 {dimension_numbers = #tpu.dot_dimension_numbers<[1], [1], [0], [0], [0, 0, 1, 0], [], []>} : vector<8x16xf32>, vector<8x16xf32>, vector<8x8xf32> -> vector<8x8xf32>
    %48 = vector.extract_strided_slice %43 {offsets = [0, 0], sizes = [8, 1], strides = [1, 1]} : vector<8x8xf32> to vector<8x1xf32>
    %49 = vector.broadcast %48 : vector<8x1xf32> to vector<8x8xf32>
    %50 = arith.addf %47, %49 : vector<8x8xf32>
    %51 = vector.extract_strided_slice %45 {offsets = [0, 0], sizes = [1, 8], strides = [1, 1]} : vector<8x8xf32> to vector<1x8xf32>
    %52 = vector.broadcast %51 : vector<1x8xf32> to vector<8x8xf32>
    %53 = arith.addf %50, %52 : vector<8x8xf32>
    %c0_39 = arith.constant 0 : index
    %c0_40 = arith.constant 0 : index
    %c0_41 = arith.constant 0 : index
    %c0_42 = arith.constant 0 : index
    %54 = vector.load %arg14[%c0_39, %c0_40, %c0_41, %c0_42] : memref<1x8x8x8xf32, #tpu.memory_space<vmem>>, vector<1x1x8x8xf32>
    %55 = vector.shape_cast %54 : vector<1x1x8x8xf32> to vector<8x8xf32>
    %56 = vector.shape_cast %53 : vector<8x8xf32> to vector<1x1x8x8xf32>
    tpu.vector_store %arg14[%c0_39, %c0_40, %c0_41, %c0_42], %56 {strides = array<i32>} : memref<1x8x8x8xf32, #tpu.memory_space<vmem>>, vector<1x1x8x8xf32>,
    %57 = vector.extract_strided_slice %38 {offsets = [0, 16], sizes = [8, 16], strides = [1, 1]} : vector<8x128xf32> to vector<8x16xf32>
    %cst_43 = arith.constant dense<0.000000e+00> : vector<8x8xf32>
    %58 = tpu.matmul %57, %20, %cst_43 {dimension_numbers = #tpu.dot_dimension_numbers<[1], [1], [0], [0], [0, 0, 1, 0], [], []>} : vector<8x16xf32>, vector<8x16xf32>, vector<8x8xf32> -> vector<8x8xf32>
    %59 = vector.extract_strided_slice %43 {offsets = [0, 1], sizes = [8, 1], strides = [1, 1]} : vector<8x8xf32> to vector<8x1xf32>
    %60 = vector.broadcast %59 : vector<8x1xf32> to vector<8x8xf32>
    %61 = arith.addf %58, %60 : vector<8x8xf32>
    %62 = vector.extract_strided_slice %45 {offsets = [1, 0], sizes = [1, 8], strides = [1, 1]} : vector<8x8xf32> to vector<1x8xf32>
    %63 = vector.broadcast %62 : vector<1x8xf32> to vector<8x8xf32>
    %64 = arith.addf %61, %63 : vector<8x8xf32>
    %c0_44 = arith.constant 0 : index
    %c1 = arith.constant 1 : index
    %c0_45 = arith.constant 0 : index
    %c0_46 = arith.constant 0 : index
    %65 = vector.load %arg14[%c0_44, %c1, %c0_45, %c0_46] : memref<1x8x8x8xf32, #tpu.memory_space<vmem>>, vector<1x1x8x8xf32>
    %66 = vector.shape_cast %65 : vector<1x1x8x8xf32> to vector<8x8xf32>
    %67 = vector.shape_cast %64 : vector<8x8xf32> to vector<1x1x8x8xf32>
    tpu.vector_store %arg14[%c0_44, %c1, %c0_45, %c0_46], %67 {strides = array<i32>} : memref<1x8x8x8xf32, #tpu.memory_space<vmem>>, vector<1x1x8x8xf32>,
    %68 = vector.extract_strided_slice %38 {offsets = [0, 32], sizes = [8, 16], strides = [1, 1]} : vector<8x128xf32> to vector<8x16xf32>
    %cst_47 = arith.constant dense<0.000000e+00> : vector<8x8xf32>
    %69 = tpu.matmul %68, %20, %cst_47 {dimension_numbers = #tpu.dot_dimension_numbers<[1], [1], [0], [0], [0, 0, 1, 0], [], []>} : vector<8x16xf32>, vector<8x16xf32>, vector<8x8xf32> -> vector<8x8xf32>
    %70 = vector.extract_strided_slice %43 {offsets = [0, 2], sizes = [8, 1], strides = [1, 1]} : vector<8x8xf32> to vector<8x1xf32>
    %71 = vector.broadcast %70 : vector<8x1xf32> to vector<8x8xf32>
    %72 = arith.addf %69, %71 : vector<8x8xf32>
    %73 = vector.extract_strided_slice %45 {offsets = [2, 0], sizes = [1, 8], strides = [1, 1]} : vector<8x8xf32> to vector<1x8xf32>
    %74 = vector.broadcast %73 : vector<1x8xf32> to vector<8x8xf32>
    %75 = arith.addf %72, %74 : vector<8x8xf32>
    %c0_48 = arith.constant 0 : index
    %c2 = arith.constant 2 : index
    %c0_49 = arith.constant 0 : index
    %c0_50 = arith.constant 0 : index
    %76 = vector.load %arg14[%c0_48, %c2, %c0_49, %c0_50] : memref<1x8x8x8xf32, #tpu.memory_space<vmem>>, vector<1x1x8x8xf32>
    %77 = vector.shape_cast %76 : vector<1x1x8x8xf32> to vector<8x8xf32>
    %78 = vector.shape_cast %75 : vector<8x8xf32> to vector<1x1x8x8xf32>
    tpu.vector_store %arg14[%c0_48, %c2, %c0_49, %c0_50], %78 {strides = array<i32>} : memref<1x8x8x8xf32, #tpu.memory_space<vmem>>, vector<1x1x8x8xf32>,
    %79 = vector.extract_strided_slice %38 {offsets = [0, 48], sizes = [8, 16], strides = [1, 1]} : vector<8x128xf32> to vector<8x16xf32>
    %cst_51 = arith.constant dense<0.000000e+00> : vector<8x8xf32>
    %80 = tpu.matmul %79, %20, %cst_51 {dimension_numbers = #tpu.dot_dimension_numbers<[1], [1], [0], [0], [0, 0, 1, 0], [], []>} : vector<8x16xf32>, vector<8x16xf32>, vector<8x8xf32> -> vector<8x8xf32>
    %81 = vector.extract_strided_slice %43 {offsets = [0, 3], sizes = [8, 1], strides = [1, 1]} : vector<8x8xf32> to vector<8x1xf32>
    %82 = vector.broadcast %81 : vector<8x1xf32> to vector<8x8xf32>
    %83 = arith.addf %80, %82 : vector<8x8xf32>
    %84 = vector.extract_strided_slice %45 {offsets = [3, 0], sizes = [1, 8], strides = [1, 1]} : vector<8x8xf32> to vector<1x8xf32>
    %85 = vector.broadcast %84 : vector<1x8xf32> to vector<8x8xf32>
    %86 = arith.addf %83, %85 : vector<8x8xf32>
    %c0_52 = arith.constant 0 : index
    %c3 = arith.constant 3 : index
    %c0_53 = arith.constant 0 : index
    %c0_54 = arith.constant 0 : index
    %87 = vector.load %arg14[%c0_52, %c3, %c0_53, %c0_54] : memref<1x8x8x8xf32, #tpu.memory_space<vmem>>, vector<1x1x8x8xf32>
    %88 = vector.shape_cast %87 : vector<1x1x8x8xf32> to vector<8x8xf32>
    %89 = vector.shape_cast %86 : vector<8x8xf32> to vector<1x1x8x8xf32>
    tpu.vector_store %arg14[%c0_52, %c3, %c0_53, %c0_54], %89 {strides = array<i32>} : memref<1x8x8x8xf32, #tpu.memory_space<vmem>>, vector<1x1x8x8xf32>,
    %90 = vector.extract_strided_slice %38 {offsets = [0, 64], sizes = [8, 16], strides = [1, 1]} : vector<8x128xf32> to vector<8x16xf32>
    %cst_55 = arith.constant dense<0.000000e+00> : vector<8x8xf32>
    %91 = tpu.matmul %90, %20, %cst_55 {dimension_numbers = #tpu.dot_dimension_numbers<[1], [1], [0], [0], [0, 0, 1, 0], [], []>} : vector<8x16xf32>, vector<8x16xf32>, vector<8x8xf32> -> vector<8x8xf32>
    %92 = vector.extract_strided_slice %43 {offsets = [0, 4], sizes = [8, 1], strides = [1, 1]} : vector<8x8xf32> to vector<8x1xf32>
    %93 = vector.broadcast %92 : vector<8x1xf32> to vector<8x8xf32>
    %94 = arith.addf %91, %93 : vector<8x8xf32>
    %95 = vector.extract_strided_slice %45 {offsets = [4, 0], sizes = [1, 8], strides = [1, 1]} : vector<8x8xf32> to vector<1x8xf32>
    %96 = vector.broadcast %95 : vector<1x8xf32> to vector<8x8xf32>
    %97 = arith.addf %94, %96 : vector<8x8xf32>
    %c0_56 = arith.constant 0 : index
    %c4 = arith.constant 4 : index
    %c0_57 = arith.constant 0 : index
    %c0_58 = arith.constant 0 : index
    %98 = vector.load %arg14[%c0_56, %c4, %c0_57, %c0_58] : memref<1x8x8x8xf32, #tpu.memory_space<vmem>>, vector<1x1x8x8xf32>
    %99 = vector.shape_cast %98 : vector<1x1x8x8xf32> to vector<8x8xf32>
    %100 = vector.shape_cast %97 : vector<8x8xf32> to vector<1x1x8x8xf32>
    tpu.vector_store %arg14[%c0_56, %c4, %c0_57, %c0_58], %100 {strides = array<i32>} : memref<1x8x8x8xf32, #tpu.memory_space<vmem>>, vector<1x1x8x8xf32>,
    %101 = vector.extract_strided_slice %38 {offsets = [0, 80], sizes = [8, 16], strides = [1, 1]} : vector<8x128xf32> to vector<8x16xf32>
    %cst_59 = arith.constant dense<0.000000e+00> : vector<8x8xf32>
    %102 = tpu.matmul %101, %20, %cst_59 {dimension_numbers = #tpu.dot_dimension_numbers<[1], [1], [0], [0], [0, 0, 1, 0], [], []>} : vector<8x16xf32>, vector<8x16xf32>, vector<8x8xf32> -> vector<8x8xf32>
    %103 = vector.extract_strided_slice %43 {offsets = [0, 5], sizes = [8, 1], strides = [1, 1]} : vector<8x8xf32> to vector<8x1xf32>
    %104 = vector.broadcast %103 : vector<8x1xf32> to vector<8x8xf32>
    %105 = arith.addf %102, %104 : vector<8x8xf32>
    %106 = vector.extract_strided_slice %45 {offsets = [5, 0], sizes = [1, 8], strides = [1, 1]} : vector<8x8xf32> to vector<1x8xf32>
    %107 = vector.broadcast %106 : vector<1x8xf32> to vector<8x8xf32>
    %108 = arith.addf %105, %107 : vector<8x8xf32>
    %c0_60 = arith.constant 0 : index
    %c5 = arith.constant 5 : index
    %c0_61 = arith.constant 0 : index
    %c0_62 = arith.constant 0 : index
    %109 = vector.load %arg14[%c0_60, %c5, %c0_61, %c0_62] : memref<1x8x8x8xf32, #tpu.memory_space<vmem>>, vector<1x1x8x8xf32>
    %110 = vector.shape_cast %109 : vector<1x1x8x8xf32> to vector<8x8xf32>
    %111 = vector.shape_cast %108 : vector<8x8xf32> to vector<1x1x8x8xf32>
    tpu.vector_store %arg14[%c0_60, %c5, %c0_61, %c0_62], %111 {strides = array<i32>} : memref<1x8x8x8xf32, #tpu.memory_space<vmem>>, vector<1x1x8x8xf32>,
    %112 = vector.extract_strided_slice %38 {offsets = [0, 96], sizes = [8, 16], strides = [1, 1]} : vector<8x128xf32> to vector<8x16xf32>
    %cst_63 = arith.constant dense<0.000000e+00> : vector<8x8xf32>
    %113 = tpu.matmul %112, %20, %cst_63 {dimension_numbers = #tpu.dot_dimension_numbers<[1], [1], [0], [0], [0, 0, 1, 0], [], []>} : vector<8x16xf32>, vector<8x16xf32>, vector<8x8xf32> -> vector<8x8xf32>
    %114 = vector.extract_strided_slice %43 {offsets = [0, 6], sizes = [8, 1], strides = [1, 1]} : vector<8x8xf32> to vector<8x1xf32>
    %115 = vector.broadcast %114 : vector<8x1xf32> to vector<8x8xf32>
    %116 = arith.addf %113, %115 : vector<8x8xf32>
    %117 = vector.extract_strided_slice %45 {offsets = [6, 0], sizes = [1, 8], strides = [1, 1]} : vector<8x8xf32> to vector<1x8xf32>
    %118 = vector.broadcast %117 : vector<1x8xf32> to vector<8x8xf32>
    %119 = arith.addf %116, %118 : vector<8x8xf32>
    %c0_64 = arith.constant 0 : index
    %c6 = arith.constant 6 : index
    %c0_65 = arith.constant 0 : index
    %c0_66 = arith.constant 0 : index
    %120 = vector.load %arg14[%c0_64, %c6, %c0_65, %c0_66] : memref<1x8x8x8xf32, #tpu.memory_space<vmem>>, vector<1x1x8x8xf32>
    %121 = vector.shape_cast %120 : vector<1x1x8x8xf32> to vector<8x8xf32>
    %122 = vector.shape_cast %119 : vector<8x8xf32> to vector<1x1x8x8xf32>
    tpu.vector_store %arg14[%c0_64, %c6, %c0_65, %c0_66], %122 {strides = array<i32>} : memref<1x8x8x8xf32, #tpu.memory_space<vmem>>, vector<1x1x8x8xf32>,
    %123 = vector.extract_strided_slice %38 {offsets = [0, 112], sizes = [8, 16], strides = [1, 1]} : vector<8x128xf32> to vector<8x16xf32>
    %cst_67 = arith.constant dense<0.000000e+00> : vector<8x8xf32>
    %124 = tpu.matmul %123, %20, %cst_67 {dimension_numbers = #tpu.dot_dimension_numbers<[1], [1], [0], [0], [0, 0, 1, 0], [], []>} : vector<8x16xf32>, vector<8x16xf32>, vector<8x8xf32> -> vector<8x8xf32>
    %125 = vector.extract_strided_slice %43 {offsets = [0, 7], sizes = [8, 1], strides = [1, 1]} : vector<8x8xf32> to vector<8x1xf32>
    %126 = vector.broadcast %125 : vector<8x1xf32> to vector<8x8xf32>
    %127 = arith.addf %124, %126 : vector<8x8xf32>
    %128 = vector.extract_strided_slice %45 {offsets = [7, 0], sizes = [1, 8], strides = [1, 1]} : vector<8x8xf32> to vector<1x8xf32>
    %129 = vector.broadcast %128 : vector<1x8xf32> to vector<8x8xf32>
    %130 = arith.addf %127, %129 : vector<8x8xf32>
    %c0_68 = arith.constant 0 : index
    %c7 = arith.constant 7 : index
    %c0_69 = arith.constant 0 : index
    %c0_70 = arith.constant 0 : index
    %131 = vector.load %arg14[%c0_68, %c7, %c0_69, %c0_70] : memref<1x8x8x8xf32, #tpu.memory_space<vmem>>, vector<1x1x8x8xf32>
    %132 = vector.shape_cast %131 : vector<1x1x8x8xf32> to vector<8x8xf32>
    %133 = vector.shape_cast %130 : vector<8x8xf32> to vector<1x1x8x8xf32>
    tpu.vector_store %arg14[%c0_68, %c7, %c0_69, %c0_70], %133 {strides = array<i32>} : memref<1x8x8x8xf32, #tpu.memory_space<vmem>>, vector<1x1x8x8xf32>,
    return
  }
  func.func @transform_0(%arg0: i32) -> (i32, i32, i32) {
    %c0_i32 = arith.constant 0 : i32
    %c0_i32_0 = arith.constant 0 : i32
    %c0_i32_1 = arith.constant 0 : i32
    return %arg0, %c0_i32, %c0_i32_0 : i32, i32, i32
  }
  func.func @transform_1(%arg0: i32) -> (i32, i32, i32) {
    %c0_i32 = arith.constant 0 : i32
    %c0_i32_0 = arith.constant 0 : i32
    %c0_i32_1 = arith.constant 0 : i32
    return %arg0, %c0_i32, %c0_i32_0 : i32, i32, i32
  }
  func.func @transform_2(%arg0: i32) -> (i32, i32) {
    %c0_i32 = arith.constant 0 : i32
    %c0_i32_0 = arith.constant 0 : i32
    %c0_i32_1 = arith.constant 0 : i32
    return %c0_i32, %c0_i32_0 : i32, i32
  }
  func.func @transform_3(%arg0: i32) -> (i32, i32) {
    %c0_i32 = arith.constant 0 : i32
    %c0_i32_0 = arith.constant 0 : i32
    %c0_i32_1 = arith.constant 0 : i32
    return %c0_i32, %c0_i32_0 : i32, i32
  }
  func.func @transform_4(%arg0: i32) -> (i32, i32) {
    %c0_i32 = arith.constant 0 : i32
    %c0_i32_0 = arith.constant 0 : i32
    %c0_i32_1 = arith.constant 0 : i32
    return %c0_i32, %c0_i32_0 : i32, i32
  }
  func.func @transform_5(%arg0: i32) -> (i32, i32) {
    %c0_i32 = arith.constant 0 : i32
    %c0_i32_0 = arith.constant 0 : i32
    %c0_i32_1 = arith.constant 0 : i32
    return %c0_i32, %c0_i32_0 : i32, i32
  }
  func.func @transform_6(%arg0: i32) -> (i32, i32) {
    %c0_i32 = arith.constant 0 : i32
    %c0_i32_0 = arith.constant 0 : i32
    %c0_i32_1 = arith.constant 0 : i32
    return %c0_i32, %c0_i32_0 : i32, i32
  }
  func.func @transform_7(%arg0: i32) -> (i32, i32) {
    %c0_i32 = arith.constant 0 : i32
    %c0_i32_0 = arith.constant 0 : i32
    %c0_i32_1 = arith.constant 0 : i32
    return %c0_i32, %c0_i32_0 : i32, i32
  }
  func.func @transform_8(%arg0: i32) -> (i32, i32) {
    %c0_i32 = arith.constant 0 : i32
    %c0_i32_0 = arith.constant 0 : i32
    %c0_i32_1 = arith.constant 0 : i32
    return %c0_i32, %c0_i32_0 : i32, i32
  }
  func.func @transform_9(%arg0: i32) -> (i32, i32) {
    %c0_i32 = arith.constant 0 : i32
    %c0_i32_0 = arith.constant 0 : i32
    %c0_i32_1 = arith.constant 0 : i32
    return %c0_i32, %c0_i32_0 : i32, i32
  }
  func.func @transform_10(%arg0: i32) -> (i32, i32) {
    %c0_i32 = arith.constant 0 : i32
    %c0_i32_0 = arith.constant 0 : i32
    %c0_i32_1 = arith.constant 0 : i32
    return %c0_i32, %c0_i32_0 : i32, i32
  }
  func.func @transform_11(%arg0: i32) -> (i32, i32) {
    %c0_i32 = arith.constant 0 : i32
    %c0_i32_0 = arith.constant 0 : i32
    %c0_i32_1 = arith.constant 0 : i32
    return %c0_i32, %c0_i32_0 : i32, i32
  }
  func.func @transform_12(%arg0: i32) -> (i32, i32, i32) {
    %c0_i32 = arith.constant 0 : i32
    %c0_i32_0 = arith.constant 0 : i32
    %c0_i32_1 = arith.constant 0 : i32
    return %arg0, %c0_i32, %c0_i32_0 : i32, i32, i32
  }
  func.func @transform_13(%arg0: i32) -> (i32, i32, i32, i32) {
    %c0_i32 = arith.constant 0 : i32
    %c0_i32_0 = arith.constant 0 : i32
    %c0_i32_1 = arith.constant 0 : i32
    %c0_i32_2 = arith.constant 0 : i32
    return %arg0, %c0_i32, %c0_i32_0, %c0_i32_1 : i32, i32, i32, i32
  }
}

</mosaic_0001>

<llo_original>
// kernel: unk_obfuscator_forward.1
$region0: #{unk_obfuscator_forward.1}
  #allocation0 [shape = 'u32[]', space=smem, size = 0x4, offset = 0x4, fixed_abs, tag = 'smem constant byte address 0x4 - core index']
  #allocation1 [shape = 'u32[144,128]{1,0:T(1,128)}', space=vmem, size = 0x12000, scoped, tag = 'internal scratch']
  %s0 = inlined_call_operand.vmem [shape: f32[4,8,64], index: 0, kind: input, shape index: {}]
  %s1 = inlined_call_operand.vmem [shape: f32[4,1,8], index: 1, kind: input, shape index: {}]
  %s2 = inlined_call_operand.vmem [shape: f32[64,64], index: 2, kind: input, shape index: {}]
  %s3 = inlined_call_operand.vmem [shape: f32[1,64], index: 3, kind: input, shape index: {}]
  %s4 = inlined_call_operand.vmem [shape: f32[64,96], index: 4, kind: input, shape index: {}]
  %s5 = inlined_call_operand.vmem [shape: f32[1,96], index: 5, kind: input, shape index: {}]
  %s6 = inlined_call_operand.vmem [shape: f32[32,32], index: 6, kind: input, shape index: {}]
  %s7 = inlined_call_operand.vmem [shape: f32[1,32], index: 7, kind: input, shape index: {}]
  %s8 = inlined_call_operand.vmem [shape: f32[16,128], index: 8, kind: input, shape index: {}]
  %s9 = inlined_call_operand.vmem [shape: f32[8,16], index: 9, kind: input, shape index: {}]
  %s10 = inlined_call_operand.vmem [shape: f32[8,16], index: 10, kind: input, shape index: {}]
  %s11 = inlined_call_operand.vmem [shape: f32[1,8], index: 11, kind: input, shape index: {}]
  %s12 = inlined_call_operand.vmem [shape: f32[4,8,8], index: 12, kind: output, shape index: {0}]
  %s13 = inlined_call_operand.vmem [shape: f32[4,8,8,8], index: 13, kind: output, shape index: {1}]
  %14 = xla_tuple %s12, %s13
  %s15 = sld [smem:[#allocation0]]
  $region89: #{unk_obfuscator_forward.1} parent=0
    _
  %s17 = ssub.s32 1, %s15
  %s18 = scalar_select 0, %s17, %s15
  loop: start=0, step=1, limit=6
  $region2: #{unk_obfuscator_forward.1} parent=0 // loop_pre_header
    _
  $region3: #{unk_obfuscator_forward.1} parent=0 // loop_header
    %s20 = sphi 0, %s24
    %p21 = scmp.ge.s32.totalorder %s20, 6
    %s30 = sphi 0, %s32
    %s33 = sphi 0, %s30
    %s34 = sphi 0, %s33
    %s50 = sphi 0, %s34
    %s56 = sphi 0, %s58
    %s59 = sphi 0, %s56
    %s60 = sphi 0, %s59
    %s76 = sphi 0, %s60
    %s80 = sphi 0, %s80
    %s82 = sphi 0, %s80
    %s83 = sphi 0, %s82
    %s97 = sphi 0, %s83
    %s101 = sphi 0, %s101
    %s103 = sphi 0, %s101
    %s104 = sphi 0, %s103
    %s118 = sphi 0, %s104
    %s122 = sphi 0, %s122
    %s124 = sphi 0, %s122
    %s125 = sphi 0, %s124
    %s139 = sphi 0, %s125
    %s143 = sphi 0, %s143
    %s145 = sphi 0, %s143
    %s146 = sphi 0, %s145
    %s160 = sphi 0, %s146
    %s164 = sphi 0, %s164
    %s166 = sphi 0, %s164
    %s167 = sphi 0, %s166
    %s181 = sphi 0, %s167
    %s185 = sphi 0, %s185
    %s187 = sphi 0, %s185
    %s188 = sphi 0, %s187
    %s202 = sphi 0, %s188
    %s206 = sphi 0, %s206
    %s208 = sphi 0, %s206
    %s209 = sphi 0, %s208
    %s223 = sphi 0, %s209
    %s227 = sphi 0, %s227
    %s229 = sphi 0, %s227
    %s230 = sphi 0, %s229
    %s244 = sphi 0, %s230
    %s248 = sphi 0, %s248
    %s250 = sphi 0, %s248
    %s251 = sphi 0, %s250
    %s265 = sphi 0, %s251
    %s269 = sphi 0, %s269
    %s271 = sphi 0, %s269
    %s272 = sphi 0, %s271
    %s286 = sphi 0, %s272
    %s292 = sphi 0, %s294
    %s295 = sphi 0, %s292
    %s296 = sphi 0, %s295
    %s312 = sphi 0, %s296
    %s318 = sphi 0, %s320
    %s321 = sphi 0, %s318
    %s322 = sphi 0, %s321
    %s338 = sphi 0, %s322
  $region4: #{unk_obfuscator_forward.1} parent=0 // loop_header_branch
    %23 = sbr.rel (%p21) target = $region8
  $region5: #{unk_obfuscator_forward.1} parent=0 // loop_body
    %s25 = ssub.s32 %s20, 1
    %s26 = ssub.s32 %s20, 2
    %s27 = sadd.s32 %s20, 1
    %s28 = ssub.s32 %s20, %s27
    %p29 = scmp.eq.s32.totalorder %s28, 0
    %s31 = sadd.s32 %s30, 1
    %s32 = scalar_select %p29, %s30, %s31
    %p35 = pneg %p29
    %p36 = scmp.eq.s32.totalorder %s20, 3
    %p37 = por %p35, %p36
    %p38 = scmp.ne.s32.totalorder %s30, %s33
    %p39 = scmp.eq.s32.totalorder %s20, 0
    %p40 = por %p38, %p39
    %p41 = scmp.ne.s32.totalorder %s30, %s33
    %p42 = scmp.eq.s32.totalorder %s25, 3
    %p43 = por %p41, %p42
    %p44 = scmp.ne.s32.totalorder %s33, %s34
    %p45 = scmp.eq.s32.totalorder %s25, 0
    %p46 = por %p44, %p45
    %p47 = scmp.ne.s32.totalorder %s33, %s34
    %p48 = scmp.eq.s32.totalorder %s26, 3
    %p49 = por %p47, %p48
    %p51 = scmp.ne.s32.totalorder %s34, %s50
    %p52 = scmp.eq.s32.totalorder %s26, 0
    %p53 = por %p51, %p52
    %s54 = ssub.s32 %s20, %s27
    %p55 = scmp.eq.s32.totalorder %s54, 0
    %s57 = sadd.s32 %s56, 1
    %s58 = scalar_select %p55, %s56, %s57
    %p61 = pneg %p55
    %p62 = scmp.eq.s32.totalorder %s20, 3
    %p63 = por %p61, %p62
    %p64 = scmp.ne.s32.totalorder %s56, %s59
    %p65 = scmp.eq.s32.totalorder %s20, 0
    %p66 = por %p64, %p65
    %p67 = scmp.ne.s32.totalorder %s56, %s59
    %p68 = scmp.eq.s32.totalorder %s25, 3
    %p69 = por %p67, %p68
    %p70 = scmp.ne.s32.totalorder %s59, %s60
    %p71 = scmp.eq.s32.totalorder %s25, 0
    %p72 = por %p70, %p71
    %p73 = scmp.ne.s32.totalorder %s59, %s60
    %p74 = scmp.eq.s32.totalorder %s26, 3
    %p75 = por %p73, %p74
    %p77 = scmp.ne.s32.totalorder %s60, %s76
    %p78 = scmp.eq.s32.totalorder %s26, 0
    %p79 = por %p77, %p78
    %s81 = sadd.s32 %s80, 1
    %p84 = scmp.eq.s32.totalorder %s20, 3
    %p85 = scmp.ne.s32.totalorder %s80, %s82
    %p86 = scmp.eq.s32.totalorder %s20, 0
    %p87 = por %p85, %p86
    %p88 = scmp.ne.s32.totalorder %s80, %s82
    %p89 = scmp.eq.s32.totalorder %s25, 3
    %p90 = por %p88, %p89
    %p91 = scmp.ne.s32.totalorder %s82, %s83
    %p92 = scmp.eq.s32.totalorder %s25, 0
    %p93 = por %p91, %p92
    %p94 = scmp.ne.s32.totalorder %s82, %s83
    %p95 = scmp.eq.s32.totalorder %s26, 3
    %p96 = por %p94, %p95
    %p98 = scmp.ne.s32.totalorder %s83, %s97
    %p99 = scmp.eq.s32.totalorder %s26, 0
    %p100 = por %p98, %p99
    %s102 = sadd.s32 %s101, 1
    %p105 = scmp.eq.s32.totalorder %s20, 3
    %p106 = scmp.ne.s32.totalorder %s101, %s103
    %p107 = scmp.eq.s32.totalorder %s20, 0
    %p108 = por %p106, %p107
    %p109 = scmp.ne.s32.totalorder %s101, %s103
    %p110 = scmp.eq.s32.totalorder %s25, 3
    %p111 = por %p109, %p110
    %p112 = scmp.ne.s32.totalorder %s103, %s104
    %p113 = scmp.eq.s32.totalorder %s25, 0
    %p114 = por %p112, %p113
    %p115 = scmp.ne.s32.totalorder %s103, %s104
    %p116 = scmp.eq.s32.totalorder %s26, 3
    %p117 = por %p115, %p116
    %p119 = scmp.ne.s32.totalorder %s104, %s118
    %p120 = scmp.eq.s32.totalorder %s26, 0
    %p121 = por %p119, %p120
    %s123 = sadd.s32 %s122, 1
    %p126 = scmp.eq.s32.totalorder %s20, 3
    %p127 = scmp.ne.s32.totalorder %s122, %s124
    %p128 = scmp.eq.s32.totalorder %s20, 0
    %p129 = por %p127, %p128
    %p130 = scmp.ne.s32.totalorder %s122, %s124
    %p131 = scmp.eq.s32.totalorder %s25, 3
    %p132 = por %p130, %p131
    %p133 = scmp.ne.s32.totalorder %s124, %s125
    %p134 = scmp.eq.s32.totalorder %s25, 0
    %p135 = por %p133, %p134
    %p136 = scmp.ne.s32.totalorder %s124, %s125
    %p137 = scmp.eq.s32.totalorder %s26, 3
    %p138 = por %p136, %p137
    %p140 = scmp.ne.s32.totalorder %s125, %s139
    %p141 = scmp.eq.s32.totalorder %s26, 0
    %p142 = por %p140, %p141
    %s144 = sadd.s32 %s143, 1
    %p147 = scmp.eq.s32.totalorder %s20, 3
    %p148 = scmp.ne.s32.totalorder %s143, %s145
    %p149 = scmp.eq.s32.totalorder %s20, 0
    %p150 = por %p148, %p149
    %p151 = scmp.ne.s32.totalorder %s143, %s145
    %p152 = scmp.eq.s32.totalorder %s25, 3
    %p153 = por %p151, %p152
    %p154 = scmp.ne.s32.totalorder %s145, %s146
    %p155 = scmp.eq.s32.totalorder %s25, 0
    %p156 = por %p154, %p155
    %p157 = scmp.ne.s32.totalorder %s145, %s146
    %p158 = scmp.eq.s32.totalorder %s26, 3
    %p159 = por %p157, %p158
    %p161 = scmp.ne.s32.totalorder %s146, %s160
    %p162 = scmp.eq.s32.totalorder %s26, 0
    %p163 = por %p161, %p162
    %s165 = sadd.s32 %s164, 1
    %p168 = scmp.eq.s32.totalorder %s20, 3
    %p169 = scmp.ne.s32.totalorder %s164, %s166
    %p170 = scmp.eq.s32.totalorder %s20, 0
    %p171 = por %p169, %p170
    %p172 = scmp.ne.s32.totalorder %s164, %s166
    %p173 = scmp.eq.s32.totalorder %s25, 3
    %p174 = por %p172, %p173
    %p175 = scmp.ne.s32.totalorder %s166, %s167
    %p176 = scmp.eq.s32.totalorder %s25, 0
    %p177 = por %p175, %p176
    %p178 = scmp.ne.s32.totalorder %s166, %s167
    %p179 = scmp.eq.s32.totalorder %s26, 3
    %p180 = por %p178, %p179
    %p182 = scmp.ne.s32.totalorder %s167, %s181
    %p183 = scmp.eq.s32.totalorder %s26, 0
    %p184 = por %p182, %p183
    %s186 = sadd.s32 %s185, 1
    %p189 = scmp.eq.s32.totalorder %s20, 3
    %p190 = scmp.ne.s32.totalorder %s185, %s187
    %p191 = scmp.eq.s32.totalorder %s20, 0
    %p192 = por %p190, %p191
    %p193 = scmp.ne.s32.totalorder %s185, %s187
    %p194 = scmp.eq.s32.totalorder %s25, 3
    %p195 = por %p193, %p194
    %p196 = scmp.ne.s32.totalorder %s187, %s188
    %p197 = scmp.eq.s32.totalorder %s25, 0
    %p198 = por %p196, %p197
    %p199 = scmp.ne.s32.totalorder %s187, %s188
    %p200 = scmp.eq.s32.totalorder %s26, 3
    %p201 = por %p199, %p200
    %p203 = scmp.ne.s32.totalorder %s188, %s202
    %p204 = scmp.eq.s32.totalorder %s26, 0
    %p205 = por %p203, %p204
    %s207 = sadd.s32 %s206, 1
    %p210 = scmp.eq.s32.totalorder %s20, 3
    %p211 = scmp.ne.s32.totalorder %s206, %s208
    %p212 = scmp.eq.s32.totalorder %s20, 0
    %p213 = por %p211, %p212
    %p214 = scmp.ne.s32.totalorder %s206, %s208
    %p215 = scmp.eq.s32.totalorder %s25, 3
    %p216 = por %p214, %p215
    %p217 = scmp.ne.s32.totalorder %s208, %s209
    %p218 = scmp.eq.s32.totalorder %s25, 0
    %p219 = por %p217, %p218
    %p220 = scmp.ne.s32.totalorder %s208, %s209
    %p221 = scmp.eq.s32.totalorder %s26, 3
    %p222 = por %p220, %p221
    %p224 = scmp.ne.s32.totalorder %s209, %s223
    %p225 = scmp.eq.s32.totalorder %s26, 0
    %p226 = por %p224, %p225
    %s228 = sadd.s32 %s227, 1
    %p231 = scmp.eq.s32.totalorder %s20, 3
    %p232 = scmp.ne.s32.totalorder %s227, %s229
    %p233 = scmp.eq.s32.totalorder %s20, 0
    %p234 = por %p232, %p233
    %p235 = scmp.ne.s32.totalorder %s227, %s229
    %p236 = scmp.eq.s32.totalorder %s25, 3
    %p237 = por %p235, %p236
    %p238 = scmp.ne.s32.totalorder %s229, %s230
    %p239 = scmp.eq.s32.totalorder %s25, 0
    %p240 = por %p238, %p239
    %p241 = scmp.ne.s32.totalorder %s229, %s230
    %p242 = scmp.eq.s32.totalorder %s26, 3
    %p243 = por %p241, %p242
    %p245 = scmp.ne.s32.totalorder %s230, %s244
    %p246 = scmp.eq.s32.totalorder %s26, 0
    %p247 = por %p245, %p246
    %s249 = sadd.s32 %s248, 1
    %p252 = scmp.eq.s32.totalorder %s20, 3
    %p253 = scmp.ne.s32.totalorder %s248, %s250
    %p254 = scmp.eq.s32.totalorder %s20, 0
    %p255 = por %p253, %p254
    %p256 = scmp.ne.s32.totalorder %s248, %s250
    %p257 = scmp.eq.s32.totalorder %s25, 3
    %p258 = por %p256, %p257
    %p259 = scmp.ne.s32.totalorder %s250, %s251
    %p260 = scmp.eq.s32.totalorder %s25, 0
    %p261 = por %p259, %p260
    %p262 = scmp.ne.s32.totalorder %s250, %s251
    %p263 = scmp.eq.s32.totalorder %s26, 3
    %p264 = por %p262, %p263
    %p266 = scmp.ne.s32.totalorder %s251, %s265
    %p267 = scmp.eq.s32.totalorder %s26, 0
    %p268 = por %p266, %p267
    %s270 = sadd.s32 %s269, 1
    %p273 = scmp.eq.s32.totalorder %s20, 3
    %p274 = scmp.ne.s32.totalorder %s269, %s271
    %p275 = scmp.eq.s32.totalorder %s20, 0
    %p276 = por %p274, %p275
    %p277 = scmp.ne.s32.totalorder %s269, %s271
    %p278 = scmp.eq.s32.totalorder %s25, 3
    %p279 = por %p277, %p278
    %p280 = scmp.ne.s32.totalorder %s271, %s272
    %p281 = scmp.eq.s32.totalorder %s25, 0
    %p282 = por %p280, %p281
    %p283 = scmp.ne.s32.totalorder %s271, %s272
    %p284 = scmp.eq.s32.totalorder %s26, 3
    %p285 = por %p283, %p284
    %p287 = scmp.ne.s32.totalorder %s272, %s286
    %p288 = scmp.eq.s32.totalorder %s26, 0
    %p289 = por %p287, %p288
    %s290 = ssub.s32 %s20, %s27
    %p291 = scmp.eq.s32.totalorder %s290, 0
    %s293 = sadd.s32 %s292, 1
    %s294 = scalar_select %p291, %s292, %s293
    %p297 = pneg %p291
    %p298 = scmp.eq.s32.totalorder %s20, 3
    %p299 = por %p297, %p298
    %p300 = scmp.ne.s32.totalorder %s292, %s295
    %p301 = scmp.eq.s32.totalorder %s20, 0
    %p302 = por %p300, %p301
    %p303 = scmp.ne.s32.totalorder %s292, %s295
    %p304 = scmp.eq.s32.totalorder %s25, 3
    %p305 = por %p303, %p304
    %p306 = scmp.ne.s32.totalorder %s295, %s296
    %p307 = scmp.eq.s32.totalorder %s25, 0
    %p308 = por %p306, %p307
    %p309 = scmp.ne.s32.totalorder %s295, %s296
    %p310 = scmp.eq.s32.totalorder %s26, 3
    %p311 = por %p309, %p310
    %p313 = scmp.ne.s32.totalorder %s296, %s312
    %p314 = scmp.eq.s32.totalorder %s26, 0
    %p315 = por %p313, %p314
    %s316 = ssub.s32 %s20, %s27
    %p317 = scmp.eq.s32.totalorder %s316, 0
    %s319 = sadd.s32 %s318, 1
    %s320 = scalar_select %p317, %s318, %s319
    %p323 = pneg %p317
    %p324 = scmp.eq.s32.totalorder %s20, 3
    %p325 = por %p323, %p324
    %p326 = scmp.ne.s32.totalorder %s318, %s321
    %p327 = scmp.eq.s32.totalorder %s20, 0
    %p328 = por %p326, %p327
    %p329 = scmp.ne.s32.totalorder %s318, %s321
    %p330 = scmp.eq.s32.totalorder %s25, 3
    %p331 = por %p329, %p330
    %p332 = scmp.ne.s32.totalorder %s321, %s322
    %p333 = scmp.eq.s32.totalorder %s25, 0
    %p334 = por %p332, %p333
    %p335 = scmp.ne.s32.totalorder %s321, %s322
    %p336 = scmp.eq.s32.totalorder %s26, 3
    %p337 = por %p335, %p336
    %p339 = scmp.ne.s32.totalorder %s322, %s338
    %p340 = scmp.eq.s32.totalorder %s26, 0
    %p341 = por %p339, %p340
    %p342 = scmp.le.s32.totalorder 1, %s20
    %p343 = scmp.lt.s32.totalorder %s20, 5
    %p344 = pnand %p342, %p343
    %p345 = pneg %p344
    // Predicated region
    $region9: #{unk_obfuscator_forward.1} parent=5 // pred_check
      _
    $region10: #{unk_obfuscator_forward.1} parent=5 // pred_check_branch
      %347 = sbr.rel (%p344) target = $region12
    $region11: #{unk_obfuscator_forward.1} parent=5 // pred_region
      %s348 = ssub.s32 %s20, 1
      // Predicated region
      $region13: #{unk_obfuscator_forward.1} parent=11 // pred_check
        %p349 = pneg %p93
      $region14: #{unk_obfuscator_forward.1} parent=11 // pred_check_branch
        %351 = sbr.rel (%p349) target = $region16
      $region15: #{unk_obfuscator_forward.1} parent=11 // pred_region
        _
      $region16: #{unk_obfuscator_forward.1} parent=11 // pred_fallthru
        _
      // Predicated region
      $region17: #{unk_obfuscator_forward.1} parent=11 // pred_check
        %p352 = pneg %p114
      $region18: #{unk_obfuscator_forward.1} parent=11 // pred_check_branch
        %354 = sbr.rel (%p352) target = $region20
      $region19: #{unk_obfuscator_forward.1} parent=11 // pred_region
        _
      $region20: #{unk_obfuscator_forward.1} parent=11 // pred_fallthru
        _
      // Predicated region
      $region21: #{unk_obfuscator_forward.1} parent=11 // pred_check
        %p355 = pneg %p135
      $region22: #{unk_obfuscator_forward.1} parent=11 // pred_check_branch
        %357 = sbr.rel (%p355) target = $region24
      $region23: #{unk_obfuscator_forward.1} parent=11 // pred_region
        _
      $region24: #{unk_obfuscator_forward.1} parent=11 // pred_fallthru
        _
      // Predicated region
      $region25: #{unk_obfuscator_forward.1} parent=11 // pred_check
        %p358 = pneg %p156
      $region26: #{unk_obfuscator_forward.1} parent=11 // pred_check_branch
        %360 = sbr.rel (%p358) target = $region28
      $region27: #{unk_obfuscator_forward.1} parent=11 // pred_region
        _
      $region28: #{unk_obfuscator_forward.1} parent=11 // pred_fallthru
        _
      // Predicated region
      $region29: #{unk_obfuscator_forward.1} parent=11 // pred_check
        %p361 = pneg %p177
      $region30: #{unk_obfuscator_forward.1} parent=11 // pred_check_branch
        %363 = sbr.rel (%p361) target = $region32
      $region31: #{unk_obfuscator_forward.1} parent=11 // pred_region
        _
      $region32: #{unk_obfuscator_forward.1} parent=11 // pred_fallthru
        _
      // Predicated region
      $region33: #{unk_obfuscator_forward.1} parent=11 // pred_check
        %p364 = pneg %p198
      $region34: #{unk_obfuscator_forward.1} parent=11 // pred_check_branch
        %366 = sbr.rel (%p364) target = $region36
      $region35: #{unk_obfuscator_forward.1} parent=11 // pred_region
        _
      $region36: #{unk_obfuscator_forward.1} parent=11 // pred_fallthru
        _
      // Predicated region
      $region37: #{unk_obfuscator_forward.1} parent=11 // pred_check
        %p367 = pneg %p219
      $region38: #{unk_obfuscator_forward.1} parent=11 // pred_check_branch
        %369 = sbr.rel (%p367) target = $region40
      $region39: #{unk_obfuscator_forward.1} parent=11 // pred_region
        _
      $region40: #{unk_obfuscator_forward.1} parent=11 // pred_fallthru
        _
      // Predicated region
      $region41: #{unk_obfuscator_forward.1} parent=11 // pred_check
        %p370 = pneg %p240
      $region42: #{unk_obfuscator_forward.1} parent=11 // pred_check_branch
        %372 = sbr.rel (%p370) target = $region44
      $region43: #{unk_obfuscator_forward.1} parent=11 // pred_region
        _
      $region44: #{unk_obfuscator_forward.1} parent=11 // pred_fallthru
        _
      // Predicated region
      $region45: #{unk_obfuscator_forward.1} parent=11 // pred_check
        %p373 = pneg %p261
      $region46: #{unk_obfuscator_forward.1} parent=11 // pred_check_branch
        %375 = sbr.rel (%p373) target = $region48
      $region47: #{unk_obfuscator_forward.1} parent=11 // pred_region
        _
      $region48: #{unk_obfuscator_forward.1} parent=11 // pred_fallthru
        _
      // Predicated region
      $region49: #{unk_obfuscator_forward.1} parent=11 // pred_check
        %p376 = pneg %p282
      $region50: #{unk_obfuscator_forward.1} parent=11 // pred_check_branch
        %378 = sbr.rel (%p376) target = $region52
      $region51: #{unk_obfuscator_forward.1} parent=11 // pred_region
        _
      $region52: #{unk_obfuscator_forward.1} parent=11 // pred_fallthru
        _
    $region12: #{unk_obfuscator_forward.1} parent=5 // pred_fallthru
      _
    %p379 = scmp.lt.s32.totalorder %s20, 4
    // Predicated region
    $region53: #{unk_obfuscator_forward.1} parent=5 // pred_check
      %p380 = pneg %p379
    $region54: #{unk_obfuscator_forward.1} parent=5 // pred_check_branch
      %382 = sbr.rel (%p380) target = $region56
    $region55: #{unk_obfuscator_forward.1} parent=5 // pred_region
      // Predicated region
      $region57: #{unk_obfuscator_forward.1} parent=55 // pred_check
        %p383 = pneg %p40
      $region58: #{unk_obfuscator_forward.1} parent=55 // pred_check_branch
        %385 = sbr.rel (%p383) target = $region60
      $region59: #{unk_obfuscator_forward.1} parent=55 // pred_region
        %p386 = scmp.lt.s32.totalorder %s20, 3
        %s387 = scalar_select %p386, %s20, 3
        %s388 = smul.addr %s387, 8
        %s389 = scalar_lea.vmem %s0, %s388
      $region60: #{unk_obfuscator_forward.1} parent=55 // pred_fallthru
        _
      // Predicated region
      $region61: #{unk_obfuscator_forward.1} parent=55 // pred_check
        %p390 = pneg %p66
      $region62: #{unk_obfuscator_forward.1} parent=55 // pred_check_branch
        %392 = sbr.rel (%p390) target = $region64
      $region63: #{unk_obfuscator_forward.1} parent=55 // pred_region
        %p393 = scmp.lt.s32.totalorder %s20, 3
        %s394 = scalar_select %p393, %s20, 3
        %s395 = scalar_lea.vmem %s1, %s394
      $region64: #{unk_obfuscator_forward.1} parent=55 // pred_fallthru
        _
    $region56: #{unk_obfuscator_forward.1} parent=5 // pred_fallthru
      _
    %p396 = scmp.le.s32.totalorder 1, %s20
    %p397 = scmp.lt.s32.totalorder %s20, 5
    %p398 = pnand %p396, %p397
    %p399 = pneg %p398
    // Predicated region
    $region65: #{unk_obfuscator_forward.1} parent=5 // pred_check
      _
    $region66: #{unk_obfuscator_forward.1} parent=5 // pred_check_branch
      %401 = sbr.rel (%p398) target = $region68
    $region67: #{unk_obfuscator_forward.1} parent=5 // pred_region
      %s402 = ssub.s32 %s20, 1
      %p403 = scmp.lt.s32.totalorder %s25, 3
      %s404 = scalar_select %p403, %s25, 3
      %s405 = smul.addr %s404, 8
      %s406 = scalar_lea.vmem %s0, %s405
      %p407 = pneg %p46
      %p408 = pneg %p43
      %p409 = scmp.lt.s32.totalorder %s25, 3
      %s410 = scalar_select %p409, %s25, 3
      %s411 = scalar_lea.vmem %s1, %s410
      %p412 = pneg %p72
      %p413 = pneg %p69
      %p414 = pneg %p93
      %p415 = pneg %p90
      %p416 = pneg %p114
      %p417 = pneg %p111
      %p418 = pneg %p135
      %p419 = pneg %p132
      %p420 = pneg %p156
      %p421 = pneg %p153
      %p422 = pneg %p177
      %p423 = pneg %p174
      %p424 = pneg %p198
      %p425 = pneg %p195
      %p426 = pneg %p219
      %p427 = pneg %p216
      %p428 = pneg %p240
      %p429 = pneg %p237
      %p430 = pneg %p261
      %p431 = pneg %p258
      %p432 = pneg %p282
      %p433 = pneg %p279
      %p434 = pneg %p308
      %p435 = pneg %p305
      %p436 = scmp.lt.s32.totalorder %s25, 3
      %s437 = scalar_select %p436, %s25, 3
      %s438 = smul.addr %s437, 8
      %s439 = scalar_lea.vmem %s12, %s438
      %p440 = pneg %p334
      %p441 = pneg %p331
      %p442 = scmp.lt.s32.totalorder %s25, 3
      %s443 = scalar_select %p442, %s25, 3
      %s444 = smul.addr %s443, 8
      %s445 = smul.addr %s444, 8
      %s446 = scalar_lea.vmem %s13, %s445
      %p447 = scmp.lt.s32.totalorder %s25, 3
      %s448 = scalar_select %p447, %s25, 3
      %s449 = smul.addr %s448, 8
      %s450 = scalar_lea.vmem %s0, %s449
      %p451 = scmp.lt.s32.totalorder %s25, 3
      %s452 = scalar_select %p451, %s25, 3
      %s453 = scalar_lea.vmem %s1, %s452
      %p454 = scmp.lt.s32.totalorder %s25, 3
      %s455 = scalar_select %p454, %s25, 3
      %s456 = smul.addr %s455, 8
      %s457 = scalar_lea.vmem %s12, %s456
      %p458 = scmp.lt.s32.totalorder %s25, 3
      %s459 = scalar_select %p458, %s25, 3
      %s460 = smul.addr %s459, 8
      %s461 = smul.addr %s460, 8
      %s462 = scalar_lea.vmem %s13, %s461
      %v463 = vld [vmem:[%s450] sm:$0xff]
      %v464 = vld [vmem:[%s453] sm:$0x1]
      %v465 = vld [vmem:[%s2] sm:$0xff]
      %v466 = vld [vmem:[%s2 + $0x8] sm:$0xff]
      %v467 = vld [vmem:[%s2 + $0x10] sm:$0xff]
      %v468 = vld [vmem:[%s2 + $0x18] sm:$0xff]
      %v469 = vld [vmem:[%s2 + $0x20] sm:$0xff]
      %v470 = vld [vmem:[%s2 + $0x28] sm:$0xff]
      %v471 = vld [vmem:[%s2 + $0x30] sm:$0xff]
      %v472 = vld [vmem:[%s2 + $0x38] sm:$0xff]
      %v473 = vld [vmem:[%s3] sm:$0x1]
      %v475 = vlaneseq
      %v476 = vshrl.u32 %v475, 7
      %v477 = vsub.s32 0, %v476
      %v478 = vrot.slane %v473, %v477
      %vm480 = vcmask 523264
      %v482 = vsel %vm480, %v463, 0
      %484 = vmatprep.subr.mxu0 0.0
      %485 = vmatpush1.msra.mxu0 %v465
      %486 = vmatprep.subr.mxu0 0.0
      %487 = vmatpush1.msra.mxu0 %v466
      %488 = vmatprep.subr.mxu0 0.0
      %489 = vmatpush1.msra.mxu0 %v467
      %490 = vmatprep.subr.mxu0 0.0
      %491 = vmatpush1.msra.mxu0 %v468
      %492 = vmatprep.subr.mxu0 0.0
      %493 = vmatpush1.msra.mxu0 %v469
      %494 = vmatprep.subr.mxu0 0.0
      %495 = vmatpush1.msra.mxu0 %v470
      %496 = vmatprep.subr.mxu0 0.0
      %497 = vmatpush1.msra.mxu0 %v471
      %498 = vmatprep.subr.mxu0 0.0
      %499 = vmatpush1.msra.mxu0 %v472
      %500 = vmatprep.subr.mxu0 0.0
      %501 = vmatpush1.msra.mxu0 0.0
      %502 = vmatprep.subr.mxu0 0.0
      %503 = vmatpush1.msra.mxu0 0.0
      %504 = vmatprep.subr.mxu0 0.0
      %505 = vmatpush1.msra.mxu0 0.0
      %506 = vmatprep.subr.mxu0 0.0
      %507 = vmatpush1.msra.mxu0 0.0
      %508 = vmatprep.subr.mxu0 0.0
      %509 = vmatpush1.msra.mxu0 0.0
      %510 = vmatprep.subr.mxu0 0.0
      %511 = vmatpush1.msra.mxu0 0.0
      %512 = vmatprep.subr.mxu0 0.0
      %513 = vmatpush1.msra.mxu0 0.0
      %514 = vmatprep.subr.mxu0 0.0
      %515 = vmatpush1.msra.mxu0 0.0
      %516 = vmatprep.subr.mxu0 0.0
      %517 = vmatpush1.msra.mxu0 0.0
      %518 = vmatprep.subr.mxu0 0.0
      %519 = vmatpush1.msra.mxu0 0.0
      %520 = vmatprep.subr.mxu0 0.0
      %521 = vmatpush1.msra.mxu0 0.0
      %522 = vmatprep.subr.mxu0 0.0
      %523 = vmatpush1.msra.mxu0 0.0
      %524 = vmatprep.subr.mxu0 0.0
      %525 = vmatpush1.msra.mxu0 0.0
      %526 = vmatprep.subr.mxu0 0.0
      %527 = vmatpush1.msra.mxu0 0.0
      %528 = vmatprep.subr.mxu0 0.0
      %529 = vmatpush1.msra.mxu0 0.0
      %530 = vmatprep.subr.mxu0 0.0
      %531 = vmatpush1.msra.mxu0 0.0
      %532 = vmatprep.subr.mxu0 0.0
      %533 = vmatpush1.msra.mxu0 0.0
      %534 = vmatprep.subr.mxu0 0.0
      %535 = vmatpush1.msra.mxu0 0.0
      %536 = vmatprep.subr.mxu0 0.0
      %537 = vmatpush1.msra.mxu0 0.0
      %538 = vmatprep.subr.mxu0 0.0
      %539 = vmatpush1.msra.mxu0 0.0
      %540 = vmatprep.subr.mxu0 0.0
      %541 = vmatpush1.msra.mxu0 0.0
      %542 = vmatprep.subr.mxu0 0.0
      %543 = vmatpush1.msra.mxu0 0.0
      %544 = vmatprep.subr.mxu0 0.0
      %545 = vmatpush1.msra.mxu0 0.0
      %546 = vmatprep.subr.mxu0 0.0
      %547 = vmatpush1.msra.mxu0 0.0
      %548 = vmatprep.mubr.f32.mxu0 0.0
      %549 = vmatmul.mubr.f32.gmra.mrb[0].mxu0 %v482
      %v550 = vpop.f32.mrb[0].mxu0
      %v551 = vadd.f32 %v478, %v550
      %v552 = vpop.f32.mrb[0].mxu0
      %553 = vdwg.mxu0
      %v554 = vtanh.pop %v551
      %v555 = vld [vmem:[%s4] sm:$0xff]
      %v556 = vld [vmem:[%s4 + $0x8] sm:$0xff]
      %v557 = vld [vmem:[%s4 + $0x10] sm:$0xff]
      %v558 = vld [vmem:[%s4 + $0x18] sm:$0xff]
      %v559 = vld [vmem:[%s4 + $0x20] sm:$0xff]
      %v560 = vld [vmem:[%s4 + $0x28] sm:$0xff]
      %v561 = vld [vmem:[%s4 + $0x30] sm:$0xff]
      %v562 = vld [vmem:[%s4 + $0x38] sm:$0xff]
      %v563 = vld [vmem:[%s5] sm:$0x1]
      %v565 = vlaneseq
      %v566 = vshrl.u32 %v565, 7
      %v567 = vsub.s32 0, %v566
      %v568 = vrot.slane %v563, %v567
      %v571 = vsel %vm480, %v554, 0
      %573 = vmatprep.subr.mxu0 0.0
      %574 = vmatpush1.msra.mxu0 %v555
      %575 = vmatprep.subr.mxu0 0.0
      %576 = vmatpush1.msra.mxu0 %v556
      %577 = vmatprep.subr.mxu0 0.0
      %578 = vmatpush1.msra.mxu0 %v557
      %579 = vmatprep.subr.mxu0 0.0
      %580 = vmatpush1.msra.mxu0 %v558
      %581 = vmatprep.subr.mxu0 0.0
      %582 = vmatpush1.msra.mxu0 %v559
      %583 = vmatprep.subr.mxu0 0.0
      %584 = vmatpush1.msra.mxu0 %v560
      %585 = vmatprep.subr.mxu0 0.0
      %586 = vmatpush1.msra.mxu0 %v561
      %587 = vmatprep.subr.mxu0 0.0
      %588 = vmatpush1.msra.mxu0 %v562
      %589 = vmatprep.subr.mxu0 0.0
      %590 = vmatpush1.msra.mxu0 0.0
      %591 = vmatprep.subr.mxu0 0.0
      %592 = vmatpush1.msra.mxu0 0.0
      %593 = vmatprep.subr.mxu0 0.0
      %594 = vmatpush1.msra.mxu0 0.0
      %595 = vmatprep.subr.mxu0 0.0
      %596 = vmatpush1.msra.mxu0 0.0
      %597 = vmatprep.subr.mxu0 0.0
      %598 = vmatpush1.msra.mxu0 0.0
      %599 = vmatprep.subr.mxu0 0.0
      %600 = vmatpush1.msra.mxu0 0.0
      %601 = vmatprep.subr.mxu0 0.0
      %602 = vmatpush1.msra.mxu0 0.0
      %603 = vmatprep.subr.mxu0 0.0
      %604 = vmatpush1.msra.mxu0 0.0
      %605 = vmatprep.subr.mxu0 0.0
      %606 = vmatpush1.msra.mxu0 0.0
      %607 = vmatprep.subr.mxu0 0.0
      %608 = vmatpush1.msra.mxu0 0.0
      %609 = vmatprep.subr.mxu0 0.0
      %610 = vmatpush1.msra.mxu0 0.0
      %611 = vmatprep.subr.mxu0 0.0
      %612 = vmatpush1.msra.mxu0 0.0
      %613 = vmatprep.subr.mxu0 0.0
      %614 = vmatpush1.msra.mxu0 0.0
      %615 = vmatprep.subr.mxu0 0.0
      %616 = vmatpush1.msra.mxu0 0.0
      %617 = vmatprep.subr.mxu0 0.0
      %618 = vmatpush1.msra.mxu0 0.0
      %619 = vmatprep.subr.mxu0 0.0
      %620 = vmatpush1.msra.mxu0 0.0
      %621 = vmatprep.subr.mxu0 0.0
      %622 = vmatpush1.msra.mxu0 0.0
      %623 = vmatprep.subr.mxu0 0.0
      %624 = vmatpush1.msra.mxu0 0.0
      %625 = vmatprep.subr.mxu0 0.0
      %626 = vmatpush1.msra.mxu0 0.0
      %627 = vmatprep.subr.mxu0 0.0
      %628 = vmatpush1.msra.mxu0 0.0
      %629 = vmatprep.subr.mxu0 0.0
      %630 = vmatpush1.msra.mxu0 0.0
      %631 = vmatprep.subr.mxu0 0.0
      %632 = vmatpush1.msra.mxu0 0.0
      %633 = vmatprep.subr.mxu0 0.0
      %634 = vmatpush1.msra.mxu0 0.0
      %635 = vmatprep.subr.mxu0 0.0
      %636 = vmatpush1.msra.mxu0 0.0
      %637 = vmatprep.mubr.f32.mxu0 0.0
      %638 = vmatmul.mubr.f32.gmra.mrb[0].mxu0 %v571
      %v639 = vpop.f32.mrb[0].mxu0
      %v640 = vadd.f32 %v568, %v639
      %v641 = vpop.f32.mrb[0].mxu0
      %642 = vdwg.mxu0
      %v643 = vmax.f32 %v640, 0.0
      %v644 = vld [vmem:[%s6] sm:$0xff]
      %v645 = vld [vmem:[%s6 + $0x8] sm:$0xff]
      %v646 = vld [vmem:[%s6 + $0x10] sm:$0xff]
      %v647 = vld [vmem:[%s6 + $0x18] sm:$0xff]
      %vm648 = vcmask 261120
      %v650 = vsel %vm648, %v643, 0
      %652 = vmatprep.subr.mxu0 0.0
      %653 = vmatpush1.msra.mxu0 %v644
      %654 = vmatprep.subr.mxu0 0.0
      %655 = vmatpush1.msra.mxu0 %v645
      %656 = vmatprep.subr.mxu0 0.0
      %657 = vmatpush1.msra.mxu0 %v646
      %658 = vmatprep.subr.mxu0 0.0
      %659 = vmatpush1.msra.mxu0 %v647
      %660 = vmatprep.subr.mxu0 0.0
      %661 = vmatpush1.msra.mxu0 0.0
      %662 = vmatprep.subr.mxu0 0.0
      %663 = vmatpush1.msra.mxu0 0.0
      %664 = vmatprep.subr.mxu0 0.0
      %665 = vmatpush1.msra.mxu0 0.0
      %666 = vmatprep.subr.mxu0 0.0
      %667 = vmatpush1.msra.mxu0 0.0
      %668 = vmatprep.subr.mxu0 0.0
      %669 = vmatpush1.msra.mxu0 0.0
      %670 = vmatprep.subr.mxu0 0.0
      %671 = vmatpush1.msra.mxu0 0.0
      %672 = vmatprep.subr.mxu0 0.0
      %673 = vmatpush1.msra.mxu0 0.0
      %674 = vmatprep.subr.mxu0 0.0
      %675 = vmatpush1.msra.mxu0 0.0
      %676 = vmatprep.subr.mxu0 0.0
      %677 = vmatpush1.msra.mxu0 0.0
      %678 = vmatprep.subr.mxu0 0.0
      %679 = vmatpush1.msra.mxu0 0.0
      %680 = vmatprep.subr.mxu0 0.0
      %681 = vmatpush1.msra.mxu0 0.0
      %682 = vmatprep.subr.mxu0 0.0
      %683 = vmatpush1.msra.mxu0 0.0
      %684 = vmatprep.subr.mxu0 0.0
      %685 = vmatpush1.msra.mxu0 0.0
      %686 = vmatprep.subr.mxu0 0.0
      %687 = vmatpush1.msra.mxu0 0.0
      %688 = vmatprep.subr.mxu0 0.0
      %689 = vmatpush1.msra.mxu0 0.0
      %690 = vmatprep.subr.mxu0 0.0
      %691 = vmatpush1.msra.mxu0 0.0
      %692 = vmatprep.subr.mxu0 0.0
      %693 = vmatpush1.msra.mxu0 0.0
      %694 = vmatprep.subr.mxu0 0.0
      %695 = vmatpush1.msra.mxu0 0.0
      %696 = vmatprep.subr.mxu0 0.0
      %697 = vmatpush1.msra.mxu0 0.0
      %698 = vmatprep.subr.mxu0 0.0
      %699 = vmatpush1.msra.mxu0 0.0
      %700 = vmatprep.subr.mxu0 0.0
      %701 = vmatpush1.msra.mxu0 0.0
      %702 = vmatprep.subr.mxu0 0.0
      %703 = vmatpush1.msra.mxu0 0.0
      %704 = vmatprep.subr.mxu0 0.0
      %705 = vmatpush1.msra.mxu0 0.0
      %706 = vmatprep.subr.mxu0 0.0
      %707 = vmatpush1.msra.mxu0 0.0
      %708 = vmatprep.subr.mxu0 0.0
      %709 = vmatpush1.msra.mxu0 0.0
      %710 = vmatprep.subr.mxu0 0.0
      %711 = vmatpush1.msra.mxu0 0.0
      %712 = vmatprep.subr.mxu0 0.0
      %713 = vmatpush1.msra.mxu0 0.0
      %714 = vmatprep.subr.mxu0 0.0
      %715 = vmatpush1.msra.mxu0 0.0
      %716 = vmatprep.mubr.f32.mxu0 0.0
      %717 = vmatmul.mubr.f32.gmra.mrb[0].mxu0 %v650
      %v718 = vpop.f32.mrb[0].mxu0
      %v719 = vadd.f32 0.0, %v718
      %v720 = vpop.f32.mrb[0].mxu0
      %721 = vdwg.mxu0
      %v722 = vld [vmem:[%s7] sm:$0x1]
      %723 = vrot.lane.b32.xlu0 %v643, 96
      %v724 = vpop.permute.xlu0 %723
      %v726 = vsel %vm648, %v722, 0
      %v728 = vsel %vm648, %v724, 0
      %730 = vmatprep.subr.mxu0 0.0
      %731 = vmatpush1.xpose.msra.mxu0 %v728
      %732 = vmatprep.subr.mxu0 0.0
      %733 = vmatpush1.xpose.msra.mxu0 0.0
      %734 = vmatprep.subr.mxu0 0.0
      %735 = vmatpush1.xpose.msra.mxu0 0.0
      %736 = vmatprep.subr.mxu0 0.0
      %737 = vmatpush1.xpose.msra.mxu0 0.0
      %738 = vmatprep.subr.mxu0 0.0
      %739 = vmatpush1.xpose.msra.mxu0 0.0
      %740 = vmatprep.subr.mxu0 0.0
      %741 = vmatpush1.xpose.msra.mxu0 0.0
      %742 = vmatprep.subr.mxu0 0.0
      %743 = vmatpush1.xpose.msra.mxu0 0.0
      %744 = vmatprep.subr.mxu0 0.0
      %745 = vmatpush1.xpose.msra.mxu0 0.0
      %746 = vmatprep.subr.mxu0 0.0
      %747 = vmatpush1.xpose.msra.mxu0 0.0
      %748 = vmatprep.subr.mxu0 0.0
      %749 = vmatpush1.xpose.msra.mxu0 0.0
      %750 = vmatprep.subr.mxu0 0.0
      %751 = vmatpush1.xpose.msra.mxu0 0.0
      %752 = vmatprep.subr.mxu0 0.0
      %753 = vmatpush1.xpose.msra.mxu0 0.0
      %754 = vmatprep.subr.mxu0 0.0
      %755 = vmatpush1.xpose.msra.mxu0 0.0
      %756 = vmatprep.subr.mxu0 0.0
      %757 = vmatpush1.xpose.msra.mxu0 0.0
      %758 = vmatprep.subr.mxu0 0.0
      %759 = vmatpush1.xpose.msra.mxu0 0.0
      %760 = vmatprep.subr.mxu0 0.0
      %761 = vmatpush1.xpose.msra.mxu0 0.0
      %762 = vmatprep.subr.mxu0 0.0
      %763 = vmatpush1.xpose.msra.mxu0 0.0
      %764 = vmatprep.subr.mxu0 0.0
      %765 = vmatpush1.xpose.msra.mxu0 0.0
      %766 = vmatprep.subr.mxu0 0.0
      %767 = vmatpush1.xpose.msra.mxu0 0.0
      %768 = vmatprep.subr.mxu0 0.0
      %769 = vmatpush1.xpose.msra.mxu0 0.0
      %770 = vmatprep.subr.mxu0 0.0
      %771 = vmatpush1.xpose.msra.mxu0 0.0
      %772 = vmatprep.subr.mxu0 0.0
      %773 = vmatpush1.xpose.msra.mxu0 0.0
      %774 = vmatprep.subr.mxu0 0.0
      %775 = vmatpush1.xpose.msra.mxu0 0.0
      %776 = vmatprep.subr.mxu0 0.0
      %777 = vmatpush1.xpose.msra.mxu0 0.0
      %778 = vmatprep.subr.mxu0 0.0
      %779 = vmatpush1.xpose.msra.mxu0 0.0
      %780 = vmatprep.subr.mxu0 0.0
      %781 = vmatpush1.xpose.msra.mxu0 0.0
      %782 = vmatprep.subr.mxu0 0.0
      %783 = vmatpush1.xpose.msra.mxu0 0.0
      %784 = vmatprep.subr.mxu0 0.0
      %785 = vmatpush1.xpose.msra.mxu0 0.0
      %786 = vmatprep.subr.mxu0 0.0
      %787 = vmatpush1.xpose.msra.mxu0 0.0
      %788 = vmatprep.subr.mxu0 0.0
      %789 = vmatpush1.xpose.msra.mxu0 0.0
      %790 = vmatprep.subr.mxu0 0.0
      %791 = vmatpush1.xpose.msra.mxu0 0.0
      %792 = vmatprep.subr.mxu0 0.0
      %793 = vmatpush1.xpose.msra.mxu0 0.0
      %794 = vmatprep.mubr.f32.mxu0 0.0
      %795 = vmatmul.mubr.f32.gmra.mrb[0].mxu0 %v726
      %v796 = vpop.f32.mrb[0].mxu0
      %v797 = vadd.f32 0.0, %v796
      %v798 = vpop.f32.mrb[0].mxu0
      %799 = vdwg.mxu0
      %v800 = vlaneseq
      %v801 = vshrl.u32 %v800, 7
      %v802 = vsub.s32 0, %v801
      %v803 = vrot.slane %v797, %v802
      %v805 = vsel %vm648, %v719, 0
      %807 = vmatprep.subr.mxu0 0.0
      %808 = vmatpush1.xpose.msra.mxu0 %v728
      %809 = vmatprep.subr.mxu0 0.0
      %810 = vmatpush1.xpose.msra.mxu0 0.0
      %811 = vmatprep.subr.mxu0 0.0
      %812 = vmatpush1.xpose.msra.mxu0 0.0
      %813 = vmatprep.subr.mxu0 0.0
      %814 = vmatpush1.xpose.msra.mxu0 0.0
      %815 = vmatprep.subr.mxu0 0.0
      %816 = vmatpush1.xpose.msra.mxu0 0.0
      %817 = vmatprep.subr.mxu0 0.0
      %818 = vmatpush1.xpose.msra.mxu0 0.0
      %819 = vmatprep.subr.mxu0 0.0
      %820 = vmatpush1.xpose.msra.mxu0 0.0
      %821 = vmatprep.subr.mxu0 0.0
      %822 = vmatpush1.xpose.msra.mxu0 0.0
      %823 = vmatprep.subr.mxu0 0.0
      %824 = vmatpush1.xpose.msra.mxu0 0.0
      %825 = vmatprep.subr.mxu0 0.0
      %826 = vmatpush1.xpose.msra.mxu0 0.0
      %827 = vmatprep.subr.mxu0 0.0
      %828 = vmatpush1.xpose.msra.mxu0 0.0
      %829 = vmatprep.subr.mxu0 0.0
      %830 = vmatpush1.xpose.msra.mxu0 0.0
      %831 = vmatprep.subr.mxu0 0.0
      %832 = vmatpush1.xpose.msra.mxu0 0.0
      %833 = vmatprep.subr.mxu0 0.0
      %834 = vmatpush1.xpose.msra.mxu0 0.0
      %835 = vmatprep.subr.mxu0 0.0
      %836 = vmatpush1.xpose.msra.mxu0 0.0
      %837 = vmatprep.subr.mxu0 0.0
      %838 = vmatpush1.xpose.msra.mxu0 0.0
      %839 = vmatprep.subr.mxu0 0.0
      %840 = vmatpush1.xpose.msra.mxu0 0.0
      %841 = vmatprep.subr.mxu0 0.0
      %842 = vmatpush1.xpose.msra.mxu0 0.0
      %843 = vmatprep.subr.mxu0 0.0
      %844 = vmatpush1.xpose.msra.mxu0 0.0
      %845 = vmatprep.subr.mxu0 0.0
      %846 = vmatpush1.xpose.msra.mxu0 0.0
      %847 = vmatprep.subr.mxu0 0.0
      %848 = vmatpush1.xpose.msra.mxu0 0.0
      %849 = vmatprep.subr.mxu0 0.0
      %850 = vmatpush1.xpose.msra.mxu0 0.0
      %851 = vmatprep.subr.mxu0 0.0
      %852 = vmatpush1.xpose.msra.mxu0 0.0
      %853 = vmatprep.subr.mxu0 0.0
      %854 = vmatpush1.xpose.msra.mxu0 0.0
      %855 = vmatprep.subr.mxu0 0.0
      %856 = vmatpush1.xpose.msra.mxu0 0.0
      %857 = vmatprep.subr.mxu0 0.0
      %858 = vmatpush1.xpose.msra.mxu0 0.0
      %859 = vmatprep.subr.mxu0 0.0
      %860 = vmatpush1.xpose.msra.mxu0 0.0
      %861 = vmatprep.subr.mxu0 0.0
      %862 = vmatpush1.xpose.msra.mxu0 0.0
      %863 = vmatprep.subr.mxu0 0.0
      %864 = vmatpush1.xpose.msra.mxu0 0.0
      %865 = vmatprep.subr.mxu0 0.0
      %866 = vmatpush1.xpose.msra.mxu0 0.0
      %867 = vmatprep.subr.mxu0 0.0
      %868 = vmatpush1.xpose.msra.mxu0 0.0
      %869 = vmatprep.subr.mxu0 0.0
      %870 = vmatpush1.xpose.msra.mxu0 0.0
      %871 = vmatprep.mubr.f32.mxu0 0.0
      %872 = vmatmul.mubr.f32.gmra.mrb[0].mxu0 %v805
      %v873 = vpop.f32.mrb[0].mxu0
      %v874 = vadd.f32 %v803, %v873
      %v875 = vpop.f32.mrb[0].mxu0
      %876 = vdwg.mxu0
      %v877 = vsub.f32 1.0, %v464
      %v878 = vmul.f32 %v877, -1e+09
      %v880 = vlaneseq
      %v881 = vshrl.u32 %v880, 7
      %v882 = vsub.s32 0, %v881
      %v883 = vrot.slane %v878, %v882
      %v885 = vadd.f32 %v874, %v883
      %vm886 = vcmask 64512
      %887 = vst.msk [vmem:[%s457] sm:$0xff] %vm886, %v885
      %v888 = vld [vmem:[%s8] sm:$0xff]
      %v889 = vld [vmem:[%s8 + $0x8] sm:$0xff]
      %890 = vrot.lane.b32.xlu0 %v643, 64
      %v891 = vpop.permute.xlu0 %890
      %vm892 = vcmask 130048
      %v893 = vsel %vm892, %v891, 0
      %895 = vmatprep.subr.mxu0 0.0
      %896 = vmatpush1.msra.mxu0 %v888
      %897 = vmatprep.subr.mxu0 0.0
      %898 = vmatpush1.msra.mxu0 %v889
      %899 = vmatprep.subr.mxu0 0.0
      %900 = vmatpush1.msra.mxu0 0.0
      %901 = vmatprep.subr.mxu0 0.0
      %902 = vmatpush1.msra.mxu0 0.0
      %903 = vmatprep.subr.mxu0 0.0
      %904 = vmatpush1.msra.mxu0 0.0
      %905 = vmatprep.subr.mxu0 0.0
      %906 = vmatpush1.msra.mxu0 0.0
      %907 = vmatprep.subr.mxu0 0.0
      %908 = vmatpush1.msra.mxu0 0.0
      %909 = vmatprep.subr.mxu0 0.0
      %910 = vmatpush1.msra.mxu0 0.0
      %911 = vmatprep.subr.mxu0 0.0
      %912 = vmatpush1.msra.mxu0 0.0
      %913 = vmatprep.subr.mxu0 0.0
      %914 = vmatpush1.msra.mxu0 0.0
      %915 = vmatprep.subr.mxu0 0.0
      %916 = vmatpush1.msra.mxu0 0.0
      %917 = vmatprep.subr.mxu0 0.0
      %918 = vmatpush1.msra.mxu0 0.0
      %919 = vmatprep.subr.mxu0 0.0
      %920 = vmatpush1.msra.mxu0 0.0
      %921 = vmatprep.subr.mxu0 0.0
      %922 = vmatpush1.msra.mxu0 0.0
      %923 = vmatprep.subr.mxu0 0.0
      %924 = vmatpush1.msra.mxu0 0.0
      %925 = vmatprep.subr.mxu0 0.0
      %926 = vmatpush1.msra.mxu0 0.0
      %927 = vmatprep.subr.mxu0 0.0
      %928 = vmatpush1.msra.mxu0 0.0
      %929 = vmatprep.subr.mxu0 0.0
      %930 = vmatpush1.msra.mxu0 0.0
      %931 = vmatprep.subr.mxu0 0.0
      %932 = vmatpush1.msra.mxu0 0.0
      %933 = vmatprep.subr.mxu0 0.0
      %934 = vmatpush1.msra.mxu0 0.0
      %935 = vmatprep.subr.mxu0 0.0
      %936 = vmatpush1.msra.mxu0 0.0
      %937 = vmatprep.subr.mxu0 0.0
      %938 = vmatpush1.msra.mxu0 0.0
      %939 = vmatprep.subr.mxu0 0.0
      %940 = vmatpush1.msra.mxu0 0.0
      %941 = vmatprep.subr.mxu0 0.0
      %942 = vmatpush1.msra.mxu0 0.0
      %943 = vmatprep.subr.mxu0 0.0
      %944 = vmatpush1.msra.mxu0 0.0
      %945 = vmatprep.subr.mxu0 0.0
      %946 = vmatpush1.msra.mxu0 0.0
      %947 = vmatprep.subr.mxu0 0.0
      %948 = vmatpush1.msra.mxu0 0.0
      %949 = vmatprep.subr.mxu0 0.0
      %950 = vmatpush1.msra.mxu0 0.0
      %951 = vmatprep.subr.mxu0 0.0
      %952 = vmatpush1.msra.mxu0 0.0
      %953 = vmatprep.subr.mxu0 0.0
      %954 = vmatpush1.msra.mxu0 0.0
      %955 = vmatprep.subr.mxu0 0.0
      %956 = vmatpush1.msra.mxu0 0.0
      %957 = vmatprep.subr.mxu0 0.0
      %958 = vmatpush1.msra.mxu0 0.0
      %959 = vmatprep.mubr.f32.mxu0 0.0
      %960 = vmatmul.mubr.f32.gmra.mrb[0].mxu0 %v893
      %v961 = vpop.f32.mrb[0].mxu0
      %v962 = vadd.f32 0.0, %v961
      %v963 = vpop.f32.mrb[0].mxu0
      %964 = vdwg.mxu0
      %v965 = vld [vmem:[%s9] sm:$0xff]
      %v966 = vld [vmem:[%s11] sm:$0x1]
      %v968 = vlaneseq
      %v969 = vshrl.u32 %v968, 7
      %v970 = vsub.s32 0, %v969
      %v971 = vrot.slane %v966, %v970
      %v974 = vsel %vm892, %v965, 0
      %976 = vmatprep.subr.mxu0 0.0
      %977 = vmatpush1.xpose.msra.mxu0 %v974
      %978 = vmatprep.subr.mxu0 0.0
      %979 = vmatpush1.xpose.msra.mxu0 0.0
      %980 = vmatprep.subr.mxu0 0.0
      %981 = vmatpush1.xpose.msra.mxu0 0.0
      %982 = vmatprep.subr.mxu0 0.0
      %983 = vmatpush1.xpose.msra.mxu0 0.0
      %984 = vmatprep.subr.mxu0 0.0
      %985 = vmatpush1.xpose.msra.mxu0 0.0
      %986 = vmatprep.subr.mxu0 0.0
      %987 = vmatpush1.xpose.msra.mxu0 0.0
      %988 = vmatprep.subr.mxu0 0.0
      %989 = vmatpush1.xpose.msra.mxu0 0.0
      %990 = vmatprep.subr.mxu0 0.0
      %991 = vmatpush1.xpose.msra.mxu0 0.0
      %992 = vmatprep.subr.mxu0 0.0
      %993 = vmatpush1.xpose.msra.mxu0 0.0
      %994 = vmatprep.subr.mxu0 0.0
      %995 = vmatpush1.xpose.msra.mxu0 0.0
      %996 = vmatprep.subr.mxu0 0.0
      %997 = vmatpush1.xpose.msra.mxu0 0.0
      %998 = vmatprep.subr.mxu0 0.0
      %999 = vmatpush1.xpose.msra.mxu0 0.0
      %1000 = vmatprep.subr.mxu0 0.0
      %1001 = vmatpush1.xpose.msra.mxu0 0.0
      %1002 = vmatprep.subr.mxu0 0.0
      %1003 = vmatpush1.xpose.msra.mxu0 0.0
      %1004 = vmatprep.subr.mxu0 0.0
      %1005 = vmatpush1.xpose.msra.mxu0 0.0
      %1006 = vmatprep.subr.mxu0 0.0
      %1007 = vmatpush1.xpose.msra.mxu0 0.0
      %1008 = vmatprep.subr.mxu0 0.0
      %1009 = vmatpush1.xpose.msra.mxu0 0.0
      %1010 = vmatprep.subr.mxu0 0.0
      %1011 = vmatpush1.xpose.msra.mxu0 0.0
      %1012 = vmatprep.subr.mxu0 0.0
      %1013 = vmatpush1.xpose.msra.mxu0 0.0
      %1014 = vmatprep.subr.mxu0 0.0
      %1015 = vmatpush1.xpose.msra.mxu0 0.0
      %1016 = vmatprep.subr.mxu0 0.0
      %1017 = vmatpush1.xpose.msra.mxu0 0.0
      %1018 = vmatprep.subr.mxu0 0.0
      %1019 = vmatpush1.xpose.msra.mxu0 0.0
      %1020 = vmatprep.subr.mxu0 0.0
      %1021 = vmatpush1.xpose.msra.mxu0 0.0
      %1022 = vmatprep.subr.mxu0 0.0
      %1023 = vmatpush1.xpose.msra.mxu0 0.0
      %1024 = vmatprep.subr.mxu0 0.0
      %1025 = vmatpush1.xpose.msra.mxu0 0.0
      %1026 = vmatprep.subr.mxu0 0.0
      %1027 = vmatpush1.xpose.msra.mxu0 0.0
      %1028 = vmatprep.subr.mxu0 0.0
      %1029 = vmatpush1.xpose.msra.mxu0 0.0
      %1030 = vmatprep.subr.mxu0 0.0
      %1031 = vmatpush1.xpose.msra.mxu0 0.0
      %1032 = vmatprep.subr.mxu0 0.0
      %1033 = vmatpush1.xpose.msra.mxu0 0.0
      %1034 = vmatprep.subr.mxu0 0.0
      %1035 = vmatpush1.xpose.msra.mxu0 0.0
      %1036 = vmatprep.subr.mxu0 0.0
      %1037 = vmatpush1.xpose.msra.mxu0 0.0
      %1038 = vmatprep.subr.mxu0 0.0
      %1039 = vmatpush1.xpose.msra.mxu0 0.0
      %1040 = vmatprep.mubr.f32.mxu0 0.0
      %1041 = vmatmul.mubr.f32.gmra.mrb[0].mxu0 %v893
      %v1042 = vpop.f32.mrb[0].mxu0
      %v1043 = vadd.f32 %v971, %v1042
      %v1044 = vpop.f32.mrb[0].mxu0
      %1045 = vdwg.mxu0
      %v1046 = vld [vmem:[%s10] sm:$0xff]
      %1047 = vrot.lane.b32.xlu0 %v643, 48
      %v1048 = vpop.permute.xlu0 %1047
      %v1050 = vsel %vm892, %v1046, 0
      %v1052 = vsel %vm892, %v1048, 0
      %1054 = vmatprep.subr.mxu0 0.0
      %1055 = vmatpush1.xpose.msra.mxu0 %v1052
      %1056 = vmatprep.subr.mxu0 0.0
      %1057 = vmatpush1.xpose.msra.mxu0 0.0
      %1058 = vmatprep.subr.mxu0 0.0
      %1059 = vmatpush1.xpose.msra.mxu0 0.0
      %1060 = vmatprep.subr.mxu0 0.0
      %1061 = vmatpush1.xpose.msra.mxu0 0.0
      %1062 = vmatprep.subr.mxu0 0.0
      %1063 = vmatpush1.xpose.msra.mxu0 0.0
      %1064 = vmatprep.subr.mxu0 0.0
      %1065 = vmatpush1.xpose.msra.mxu0 0.0
      %1066 = vmatprep.subr.mxu0 0.0
      %1067 = vmatpush1.xpose.msra.mxu0 0.0
      %1068 = vmatprep.subr.mxu0 0.0
      %1069 = vmatpush1.xpose.msra.mxu0 0.0
      %1070 = vmatprep.subr.mxu0 0.0
      %1071 = vmatpush1.xpose.msra.mxu0 0.0
      %1072 = vmatprep.subr.mxu0 0.0
      %1073 = vmatpush1.xpose.msra.mxu0 0.0
      %1074 = vmatprep.subr.mxu0 0.0
      %1075 = vmatpush1.xpose.msra.mxu0 0.0
      %1076 = vmatprep.subr.mxu0 0.0
      %1077 = vmatpush1.xpose.msra.mxu0 0.0
      %1078 = vmatprep.subr.mxu0 0.0
      %1079 = vmatpush1.xpose.msra.mxu0 0.0
      %1080 = vmatprep.subr.mxu0 0.0
      %1081 = vmatpush1.xpose.msra.mxu0 0.0
      %1082 = vmatprep.subr.mxu0 0.0
      %1083 = vmatpush1.xpose.msra.mxu0 0.0
      %1084 = vmatprep.subr.mxu0 0.0
      %1085 = vmatpush1.xpose.msra.mxu0 0.0
      %1086 = vmatprep.subr.mxu0 0.0
      %1087 = vmatpush1.xpose.msra.mxu0 0.0
      %1088 = vmatprep.subr.mxu0 0.0
      %1089 = vmatpush1.xpose.msra.mxu0 0.0
      %1090 = vmatprep.subr.mxu0 0.0
      %1091 = vmatpush1.xpose.msra.mxu0 0.0
      %1092 = vmatprep.subr.mxu0 0.0
      %1093 = vmatpush1.xpose.msra.mxu0 0.0
      %1094 = vmatprep.subr.mxu0 0.0
      %1095 = vmatpush1.xpose.msra.mxu0 0.0
      %1096 = vmatprep.subr.mxu0 0.0
      %1097 = vmatpush1.xpose.msra.mxu0 0.0
      %1098 = vmatprep.subr.mxu0 0.0
      %1099 = vmatpush1.xpose.msra.mxu0 0.0
      %1100 = vmatprep.subr.mxu0 0.0
      %1101 = vmatpush1.xpose.msra.mxu0 0.0
      %1102 = vmatprep.subr.mxu0 0.0
      %1103 = vmatpush1.xpose.msra.mxu0 0.0
      %1104 = vmatprep.subr.mxu0 0.0
      %1105 = vmatpush1.xpose.msra.mxu0 0.0
      %1106 = vmatprep.subr.mxu0 0.0
      %1107 = vmatpush1.xpose.msra.mxu0 0.0
      %1108 = vmatprep.subr.mxu0 0.0
      %1109 = vmatpush1.xpose.msra.mxu0 0.0
      %1110 = vmatprep.subr.mxu0 0.0
      %1111 = vmatpush1.xpose.msra.mxu0 0.0
      %1112 = vmatprep.subr.mxu0 0.0
      %1113 = vmatpush1.xpose.msra.mxu0 0.0
      %1114 = vmatprep.subr.mxu0 0.0
      %1115 = vmatpush1.xpose.msra.mxu0 0.0
      %1116 = vmatprep.subr.mxu0 0.0
      %1117 = vmatpush1.xpose.msra.mxu0 0.0
      %1118 = vmatprep.mubr.f32.mxu0 0.0
      %1119 = vmatmul.mubr.f32.gmra.mrb[0].mxu0 %v1050
      %v1120 = vpop.f32.mrb[0].mxu0
      %v1121 = vadd.f32 0.0, %v1120
      %v1122 = vpop.f32.mrb[0].mxu0
      %1123 = vdwg.mxu0
      %1125 = vset.pattern.permute.xlu0 0
      %1126 = vperm.xlu0 %1125, %v1043
      %v1127 = vpop.permute.xlu0 %1126
      %v1130 = vsel %vm892, %v962, 0
      %1132 = vmatprep.subr.mxu0 0.0
      %1133 = vmatpush1.xpose.msra.mxu0 %v1052
      %1134 = vmatprep.subr.mxu0 0.0
      %1135 = vmatpush1.xpose.msra.mxu0 0.0
      %1136 = vmatprep.subr.mxu0 0.0
      %1137 = vmatpush1.xpose.msra.mxu0 0.0
      %1138 = vmatprep.subr.mxu0 0.0
      %1139 = vmatpush1.xpose.msra.mxu0 0.0
      %1140 = vmatprep.subr.mxu0 0.0
      %1141 = vmatpush1.xpose.msra.mxu0 0.0
      %1142 = vmatprep.subr.mxu0 0.0
      %1143 = vmatpush1.xpose.msra.mxu0 0.0
      %1144 = vmatprep.subr.mxu0 0.0
      %1145 = vmatpush1.xpose.msra.mxu0 0.0
      %1146 = vmatprep.subr.mxu0 0.0
      %1147 = vmatpush1.xpose.msra.mxu0 0.0
      %1148 = vmatprep.subr.mxu0 0.0
      %1149 = vmatpush1.xpose.msra.mxu0 0.0
      %1150 = vmatprep.subr.mxu0 0.0
      %1151 = vmatpush1.xpose.msra.mxu0 0.0
      %1152 = vmatprep.subr.mxu0 0.0
      %1153 = vmatpush1.xpose.msra.mxu0 0.0
      %1154 = vmatprep.subr.mxu0 0.0
      %1155 = vmatpush1.xpose.msra.mxu0 0.0
      %1156 = vmatprep.subr.mxu0 0.0
      %1157 = vmatpush1.xpose.msra.mxu0 0.0
      %1158 = vmatprep.subr.mxu0 0.0
      %1159 = vmatpush1.xpose.msra.mxu0 0.0
      %1160 = vmatprep.subr.mxu0 0.0
      %1161 = vmatpush1.xpose.msra.mxu0 0.0
      %1162 = vmatprep.subr.mxu0 0.0
      %1163 = vmatpush1.xpose.msra.mxu0 0.0
      %1164 = vmatprep.subr.mxu0 0.0
      %1165 = vmatpush1.xpose.msra.mxu0 0.0
      %1166 = vmatprep.subr.mxu0 0.0
      %1167 = vmatpush1.xpose.msra.mxu0 0.0
      %1168 = vmatprep.subr.mxu0 0.0
      %1169 = vmatpush1.xpose.msra.mxu0 0.0
      %1170 = vmatprep.subr.mxu0 0.0
      %1171 = vmatpush1.xpose.msra.mxu0 0.0
      %1172 = vmatprep.subr.mxu0 0.0
      %1173 = vmatpush1.xpose.msra.mxu0 0.0
      %1174 = vmatprep.subr.mxu0 0.0
      %1175 = vmatpush1.xpose.msra.mxu0 0.0
      %1176 = vmatprep.subr.mxu0 0.0
      %1177 = vmatpush1.xpose.msra.mxu0 0.0
      %1178 = vmatprep.subr.mxu0 0.0
      %1179 = vmatpush1.xpose.msra.mxu0 0.0
      %1180 = vmatprep.subr.mxu0 0.0
      %1181 = vmatpush1.xpose.msra.mxu0 0.0
      %1182 = vmatprep.subr.mxu0 0.0
      %1183 = vmatpush1.xpose.msra.mxu0 0.0
      %1184 = vmatprep.subr.mxu0 0.0
      %1185 = vmatpush1.xpose.msra.mxu0 0.0
      %1186 = vmatprep.subr.mxu0 0.0
      %1187 = vmatpush1.xpose.msra.mxu0 0.0
      %1188 = vmatprep.subr.mxu0 0.0
      %1189 = vmatpush1.xpose.msra.mxu0 0.0
      %1190 = vmatprep.subr.mxu0 0.0
      %1191 = vmatpush1.xpose.msra.mxu0 0.0
      %1192 = vmatprep.subr.mxu0 0.0
      %1193 = vmatpush1.xpose.msra.mxu0 0.0
      %1194 = vmatprep.subr.mxu0 0.0
      %1195 = vmatpush1.xpose.msra.mxu0 0.0
      %1196 = vmatprep.mubr.f32.mxu0 0.0
      %1197 = vmatmul.mubr.f32.gmra.mrb[0].mxu0 %v1130
      %v1198 = vpop.f32.mrb[0].mxu0
      %v1199 = vadd.f32 %v1127, %v1198
      %v1200 = vpop.f32.mrb[0].mxu0
      %1201 = vdwg.mxu0
      %v1202 = vlaneseq
      %v1203 = vshrl.u32 %v1202, 7
      %v1204 = vsub.s32 0, %v1203
      %v1205 = vrot.slane %v1121, %v1204
      %v1206 = vadd.f32 %v1199, %v1205
      %1207 = vst.msk [vmem:[%s462] sm:$0xff] %vm886, %v1206
      %1208 = vset.pattern.permute.xlu0 1
      %1209 = vperm.xlu0 %1208, %v1043
      %v1210 = vpop.permute.xlu0 %1209
      %1212 = vrot.lane.b32.xlu0 %v962, 112
      %v1213 = vpop.permute.xlu0 %1212
      %v1214 = vsel %vm892, %v1213, 0
      %1216 = vmatprep.subr.mxu0 0.0
      %1217 = vmatpush1.xpose.msra.mxu0 %v1052
      %1218 = vmatprep.subr.mxu0 0.0
      %1219 = vmatpush1.xpose.msra.mxu0 0.0
      %1220 = vmatprep.subr.mxu0 0.0
      %1221 = vmatpush1.xpose.msra.mxu0 0.0
      %1222 = vmatprep.subr.mxu0 0.0
      %1223 = vmatpush1.xpose.msra.mxu0 0.0
      %1224 = vmatprep.subr.mxu0 0.0
      %1225 = vmatpush1.xpose.msra.mxu0 0.0
      %1226 = vmatprep.subr.mxu0 0.0
      %1227 = vmatpush1.xpose.msra.mxu0 0.0
      %1228 = vmatprep.subr.mxu0 0.0
      %1229 = vmatpush1.xpose.msra.mxu0 0.0
      %1230 = vmatprep.subr.mxu0 0.0
      %1231 = vmatpush1.xpose.msra.mxu0 0.0
      %1232 = vmatprep.subr.mxu0 0.0
      %1233 = vmatpush1.xpose.msra.mxu0 0.0
      %1234 = vmatprep.subr.mxu0 0.0
      %1235 = vmatpush1.xpose.msra.mxu0 0.0
      %1236 = vmatprep.subr.mxu0 0.0
      %1237 = vmatpush1.xpose.msra.mxu0 0.0
      %1238 = vmatprep.subr.mxu0 0.0
      %1239 = vmatpush1.xpose.msra.mxu0 0.0
      %1240 = vmatprep.subr.mxu0 0.0
      %1241 = vmatpush1.xpose.msra.mxu0 0.0
      %1242 = vmatprep.subr.mxu0 0.0
      %1243 = vmatpush1.xpose.msra.mxu0 0.0
      %1244 = vmatprep.subr.mxu0 0.0
      %1245 = vmatpush1.xpose.msra.mxu0 0.0
      %1246 = vmatprep.subr.mxu0 0.0
      %1247 = vmatpush1.xpose.msra.mxu0 0.0
      %1248 = vmatprep.subr.mxu0 0.0
      %1249 = vmatpush1.xpose.msra.mxu0 0.0
      %1250 = vmatprep.subr.mxu0 0.0
      %1251 = vmatpush1.xpose.msra.mxu0 0.0
      %1252 = vmatprep.subr.mxu0 0.0
      %1253 = vmatpush1.xpose.msra.mxu0 0.0
      %1254 = vmatprep.subr.mxu0 0.0
      %1255 = vmatpush1.xpose.msra.mxu0 0.0
      %1256 = vmatprep.subr.mxu0 0.0
      %1257 = vmatpush1.xpose.msra.mxu0 0.0
      %1258 = vmatprep.subr.mxu0 0.0
      %1259 = vmatpush1.xpose.msra.mxu0 0.0
      %1260 = vmatprep.subr.mxu0 0.0
      %1261 = vmatpush1.xpose.msra.mxu0 0.0
      %1262 = vmatprep.subr.mxu0 0.0
      %1263 = vmatpush1.xpose.msra.mxu0 0.0
      %1264 = vmatprep.subr.mxu0 0.0
      %1265 = vmatpush1.xpose.msra.mxu0 0.0
      %1266 = vmatprep.subr.mxu0 0.0
      %1267 = vmatpush1.xpose.msra.mxu0 0.0
      %1268 = vmatprep.subr.mxu0 0.0
      %1269 = vmatpush1.xpose.msra.mxu0 0.0
      %1270 = vmatprep.subr.mxu0 0.0
      %1271 = vmatpush1.xpose.msra.mxu0 0.0
      %1272 = vmatprep.subr.mxu0 0.0
      %1273 = vmatpush1.xpose.msra.mxu0 0.0
      %1274 = vmatprep.subr.mxu0 0.0
      %1275 = vmatpush1.xpose.msra.mxu0 0.0
      %1276 = vmatprep.subr.mxu0 0.0
      %1277 = vmatpush1.xpose.msra.mxu0 0.0
      %1278 = vmatprep.subr.mxu0 0.0
      %1279 = vmatpush1.xpose.msra.mxu0 0.0
      %1280 = vmatprep.mubr.f32.mxu0 0.0
      %1281 = vmatmul.mubr.f32.gmra.mrb[0].mxu0 %v1214
      %v1282 = vpop.f32.mrb[0].mxu0
      %v1283 = vadd.f32 %v1210, %v1282
      %v1284 = vpop.f32.mrb[0].mxu0
      %1285 = vdwg.mxu0
      %v1286 = vlaneseq
      %v1287 = vshrl.u32 %v1286, 7
      %v1288 = vsub.s32 1, %v1287
      %v1289 = vrot.slane %v1121, %v1288
      %v1290 = vadd.f32 %v1283, %v1289
      %s1291 = scalar_lea.vmem %s462, 8
      %1292 = vst.msk [vmem:[%s1291] sm:$0xff] %vm886, %v1290
      %1293 = vset.pattern.permute.xlu0 2
      %1294 = vperm.xlu0 %1293, %v1043
      %v1295 = vpop.permute.xlu0 %1294
      %1297 = vrot.lane.b32.xlu0 %v962, 96
      %v1298 = vpop.permute.xlu0 %1297
      %v1299 = vsel %vm892, %v1298, 0
      %1301 = vmatprep.subr.mxu0 0.0
      %1302 = vmatpush1.xpose.msra.mxu0 %v1052
      %1303 = vmatprep.subr.mxu0 0.0
      %1304 = vmatpush1.xpose.msra.mxu0 0.0
      %1305 = vmatprep.subr.mxu0 0.0
      %1306 = vmatpush1.xpose.msra.mxu0 0.0
      %1307 = vmatprep.subr.mxu0 0.0
      %1308 = vmatpush1.xpose.msra.mxu0 0.0
      %1309 = vmatprep.subr.mxu0 0.0
      %1310 = vmatpush1.xpose.msra.mxu0 0.0
      %1311 = vmatprep.subr.mxu0 0.0
      %1312 = vmatpush1.xpose.msra.mxu0 0.0
      %1313 = vmatprep.subr.mxu0 0.0
      %1314 = vmatpush1.xpose.msra.mxu0 0.0
      %1315 = vmatprep.subr.mxu0 0.0
      %1316 = vmatpush1.xpose.msra.mxu0 0.0
      %1317 = vmatprep.subr.mxu0 0.0
      %1318 = vmatpush1.xpose.msra.mxu0 0.0
      %1319 = vmatprep.subr.mxu0 0.0
      %1320 = vmatpush1.xpose.msra.mxu0 0.0
      %1321 = vmatprep.subr.mxu0 0.0
      %1322 = vmatpush1.xpose.msra.mxu0 0.0
      %1323 = vmatprep.subr.mxu0 0.0
      %1324 = vmatpush1.xpose.msra.mxu0 0.0
      %1325 = vmatprep.subr.mxu0 0.0
      %1326 = vmatpush1.xpose.msra.mxu0 0.0
      %1327 = vmatprep.subr.mxu0 0.0
      %1328 = vmatpush1.xpose.msra.mxu0 0.0
      %1329 = vmatprep.subr.mxu0 0.0
      %1330 = vmatpush1.xpose.msra.mxu0 0.0
      %1331 = vmatprep.subr.mxu0 0.0
      %1332 = vmatpush1.xpose.msra.mxu0 0.0
      %1333 = vmatprep.subr.mxu0 0.0
      %1334 = vmatpush1.xpose.msra.mxu0 0.0
      %1335 = vmatprep.subr.mxu0 0.0
      %1336 = vmatpush1.xpose.msra.mxu0 0.0
      %1337 = vmatprep.subr.mxu0 0.0
      %1338 = vmatpush1.xpose.msra.mxu0 0.0
      %1339 = vmatprep.subr.mxu0 0.0
      %1340 = vmatpush1.xpose.msra.mxu0 0.0
      %1341 = vmatprep.subr.mxu0 0.0
      %1342 = vmatpush1.xpose.msra.mxu0 0.0
      %1343 = vmatprep.subr.mxu0 0.0
      %1344 = vmatpush1.xpose.msra.mxu0 0.0
      %1345 = vmatprep.subr.mxu0 0.0
      %1346 = vmatpush1.xpose.msra.mxu0 0.0
      %1347 = vmatprep.subr.mxu0 0.0
      %1348 = vmatpush1.xpose.msra.mxu0 0.0
      %1349 = vmatprep.subr.mxu0 0.0
      %1350 = vmatpush1.xpose.msra.mxu0 0.0
      %1351 = vmatprep.subr.mxu0 0.0
      %1352 = vmatpush1.xpose.msra.mxu0 0.0
      %1353 = vmatprep.subr.mxu0 0.0
      %1354 = vmatpush1.xpose.msra.mxu0 0.0
      %1355 = vmatprep.subr.mxu0 0.0
      %1356 = vmatpush1.xpose.msra.mxu0 0.0
      %1357 = vmatprep.subr.mxu0 0.0
      %1358 = vmatpush1.xpose.msra.mxu0 0.0
      %1359 = vmatprep.subr.mxu0 0.0
      %1360 = vmatpush1.xpose.msra.mxu0 0.0
      %1361 = vmatprep.subr.mxu0 0.0
      %1362 = vmatpush1.xpose.msra.mxu0 0.0
      %1363 = vmatprep.subr.mxu0 0.0
      %1364 = vmatpush1.xpose.msra.mxu0 0.0
      %1365 = vmatprep.mubr.f32.mxu0 0.0
      %1366 = vmatmul.mubr.f32.gmra.mrb[0].mxu0 %v1299
      %v1367 = vpop.f32.mrb[0].mxu0
      %v1368 = vadd.f32 %v1295, %v1367
      %v1369 = vpop.f32.mrb[0].mxu0
      %1370 = vdwg.mxu0
      %v1371 = vlaneseq
      %v1372 = vshrl.u32 %v1371, 7
      %v1373 = vsub.s32 2, %v1372
      %v1374 = vrot.slane %v1121, %v1373
      %v1375 = vadd.f32 %v1368, %v1374
      %s1376 = scalar_lea.vmem %s462, 16
      %1377 = vst.msk [vmem:[%s1376] sm:$0xff] %vm886, %v1375
      %1378 = vset.pattern.permute.xlu0 3
      %1379 = vperm.xlu0 %1378, %v1043
      %v1380 = vpop.permute.xlu0 %1379
      %1382 = vrot.lane.b32.xlu0 %v962, 80
      %v1383 = vpop.permute.xlu0 %1382
      %v1384 = vsel %vm892, %v1383, 0
      %1386 = vmatprep.subr.mxu0 0.0
      %1387 = vmatpush1.xpose.msra.mxu0 %v1052
      %1388 = vmatprep.subr.mxu0 0.0
      %1389 = vmatpush1.xpose.msra.mxu0 0.0
      %1390 = vmatprep.subr.mxu0 0.0
      %1391 = vmatpush1.xpose.msra.mxu0 0.0
      %1392 = vmatprep.subr.mxu0 0.0
      %1393 = vmatpush1.xpose.msra.mxu0 0.0
      %1394 = vmatprep.subr.mxu0 0.0
      %1395 = vmatpush1.xpose.msra.mxu0 0.0
      %1396 = vmatprep.subr.mxu0 0.0
      %1397 = vmatpush1.xpose.msra.mxu0 0.0
      %1398 = vmatprep.subr.mxu0 0.0
      %1399 = vmatpush1.xpose.msra.mxu0 0.0
      %1400 = vmatprep.subr.mxu0 0.0
      %1401 = vmatpush1.xpose.msra.mxu0 0.0
      %1402 = vmatprep.subr.mxu0 0.0
      %1403 = vmatpush1.xpose.msra.mxu0 0.0
      %1404 = vmatprep.subr.mxu0 0.0
      %1405 = vmatpush1.xpose.msra.mxu0 0.0
      %1406 = vmatprep.subr.mxu0 0.0
      %1407 = vmatpush1.xpose.msra.mxu0 0.0
      %1408 = vmatprep.subr.mxu0 0.0
      %1409 = vmatpush1.xpose.msra.mxu0 0.0
      %1410 = vmatprep.subr.mxu0 0.0
      %1411 = vmatpush1.xpose.msra.mxu0 0.0
      %1412 = vmatprep.subr.mxu0 0.0
      %1413 = vmatpush1.xpose.msra.mxu0 0.0
      %1414 = vmatprep.subr.mxu0 0.0
      %1415 = vmatpush1.xpose.msra.mxu0 0.0
      %1416 = vmatprep.subr.mxu0 0.0
      %1417 = vmatpush1.xpose.msra.mxu0 0.0
      %1418 = vmatprep.subr.mxu0 0.0
      %1419 = vmatpush1.xpose.msra.mxu0 0.0
      %1420 = vmatprep.subr.mxu0 0.0
      %1421 = vmatpush1.xpose.msra.mxu0 0.0
      %1422 = vmatprep.subr.mxu0 0.0
      %1423 = vmatpush1.xpose.msra.mxu0 0.0
      %1424 = vmatprep.subr.mxu0 0.0
      %1425 = vmatpush1.xpose.msra.mxu0 0.0
      %1426 = vmatprep.subr.mxu0 0.0
      %1427 = vmatpush1.xpose.msra.mxu0 0.0
      %1428 = vmatprep.subr.mxu0 0.0
      %1429 = vmatpush1.xpose.msra.mxu0 0.0
      %1430 = vmatprep.subr.mxu0 0.0
      %1431 = vmatpush1.xpose.msra.mxu0 0.0
      %1432 = vmatprep.subr.mxu0 0.0
      %1433 = vmatpush1.xpose.msra.mxu0 0.0
      %1434 = vmatprep.subr.mxu0 0.0
      %1435 = vmatpush1.xpose.msra.mxu0 0.0
      %1436 = vmatprep.subr.mxu0 0.0
      %1437 = vmatpush1.xpose.msra.mxu0 0.0
      %1438 = vmatprep.subr.mxu0 0.0
      %1439 = vmatpush1.xpose.msra.mxu0 0.0
      %1440 = vmatprep.subr.mxu0 0.0
      %1441 = vmatpush1.xpose.msra.mxu0 0.0
      %1442 = vmatprep.subr.mxu0 0.0
      %1443 = vmatpush1.xpose.msra.mxu0 0.0
      %1444 = vmatprep.subr.mxu0 0.0
      %1445 = vmatpush1.xpose.msra.mxu0 0.0
      %1446 = vmatprep.subr.mxu0 0.0
      %1447 = vmatpush1.xpose.msra.mxu0 0.0
      %1448 = vmatprep.subr.mxu0 0.0
      %1449 = vmatpush1.xpose.msra.mxu0 0.0
      %1450 = vmatprep.mubr.f32.mxu0 0.0
      %1451 = vmatmul.mubr.f32.gmra.mrb[0].mxu0 %v1384
      %v1452 = vpop.f32.mrb[0].mxu0
      %v1453 = vadd.f32 %v1380, %v1452
      %v1454 = vpop.f32.mrb[0].mxu0
      %1455 = vdwg.mxu0
      %v1456 = vlaneseq
      %v1457 = vshrl.u32 %v1456, 7
      %v1458 = vsub.s32 3, %v1457
      %v1459 = vrot.slane %v1121, %v1458
      %v1460 = vadd.f32 %v1453, %v1459
      %s1461 = scalar_lea.vmem %s462, 24
      %1462 = vst.msk [vmem:[%s1461] sm:$0xff] %vm886, %v1460
      %1463 = vset.pattern.permute.xlu0 4
      %1464 = vperm.xlu0 %1463, %v1043
      %v1465 = vpop.permute.xlu0 %1464
      %1467 = vrot.lane.b32.xlu0 %v962, 64
      %v1468 = vpop.permute.xlu0 %1467
      %v1469 = vsel %vm892, %v1468, 0
      %1471 = vmatprep.subr.mxu0 0.0
      %1472 = vmatpush1.xpose.msra.mxu0 %v1052
      %1473 = vmatprep.subr.mxu0 0.0
      %1474 = vmatpush1.xpose.msra.mxu0 0.0
      %1475 = vmatprep.subr.mxu0 0.0
      %1476 = vmatpush1.xpose.msra.mxu0 0.0
      %1477 = vmatprep.subr.mxu0 0.0
      %1478 = vmatpush1.xpose.msra.mxu0 0.0
      %1479 = vmatprep.subr.mxu0 0.0
      %1480 = vmatpush1.xpose.msra.mxu0 0.0
      %1481 = vmatprep.subr.mxu0 0.0
      %1482 = vmatpush1.xpose.msra.mxu0 0.0
      %1483 = vmatprep.subr.mxu0 0.0
      %1484 = vmatpush1.xpose.msra.mxu0 0.0
      %1485 = vmatprep.subr.mxu0 0.0
      %1486 = vmatpush1.xpose.msra.mxu0 0.0
      %1487 = vmatprep.subr.mxu0 0.0
      %1488 = vmatpush1.xpose.msra.mxu0 0.0
      %1489 = vmatprep.subr.mxu0 0.0
      %1490 = vmatpush1.xpose.msra.mxu0 0.0
      %1491 = vmatprep.subr.mxu0 0.0
      %1492 = vmatpush1.xpose.msra.mxu0 0.0
      %1493 = vmatprep.subr.mxu0 0.0
      %1494 = vmatpush1.xpose.msra.mxu0 0.0
      %1495 = vmatprep.subr.mxu0 0.0
      %1496 = vmatpush1.xpose.msra.mxu0 0.0
      %1497 = vmatprep.subr.mxu0 0.0
      %1498 = vmatpush1.xpose.msra.mxu0 0.0
      %1499 = vmatprep.subr.mxu0 0.0
      %1500 = vmatpush1.xpose.msra.mxu0 0.0
      %1501 = vmatprep.subr.mxu0 0.0
      %1502 = vmatpush1.xpose.msra.mxu0 0.0
      %1503 = vmatprep.subr.mxu0 0.0
      %1504 = vmatpush1.xpose.msra.mxu0 0.0
      %1505 = vmatprep.subr.mxu0 0.0
      %1506 = vmatpush1.xpose.msra.mxu0 0.0
      %1507 = vmatprep.subr.mxu0 0.0
      %1508 = vmatpush1.xpose.msra.mxu0 0.0
      %1509 = vmatprep.subr.mxu0 0.0
      %1510 = vmatpush1.xpose.msra.mxu0 0.0
      %1511 = vmatprep.subr.mxu0 0.0
      %1512 = vmatpush1.xpose.msra.mxu0 0.0
      %1513 = vmatprep.subr.mxu0 0.0
      %1514 = vmatpush1.xpose.msra.mxu0 0.0
      %1515 = vmatprep.subr.mxu0 0.0
      %1516 = vmatpush1.xpose.msra.mxu0 0.0
      %1517 = vmatprep.subr.mxu0 0.0
      %1518 = vmatpush1.xpose.msra.mxu0 0.0
      %1519 = vmatprep.subr.mxu0 0.0
      %1520 = vmatpush1.xpose.msra.mxu0 0.0
      %1521 = vmatprep.subr.mxu0 0.0
      %1522 = vmatpush1.xpose.msra.mxu0 0.0
      %1523 = vmatprep.subr.mxu0 0.0
      %1524 = vmatpush1.xpose.msra.mxu0 0.0
      %1525 = vmatprep.subr.mxu0 0.0
      %1526 = vmatpush1.xpose.msra.mxu0 0.0
      %1527 = vmatprep.subr.mxu0 0.0
      %1528 = vmatpush1.xpose.msra.mxu0 0.0
      %1529 = vmatprep.subr.mxu0 0.0
      %1530 = vmatpush1.xpose.msra.mxu0 0.0
      %1531 = vmatprep.subr.mxu0 0.0
      %1532 = vmatpush1.xpose.msra.mxu0 0.0
      %1533 = vmatprep.subr.mxu0 0.0
      %1534 = vmatpush1.xpose.msra.mxu0 0.0
      %1535 = vmatprep.mubr.f32.mxu0 0.0
      %1536 = vmatmul.mubr.f32.gmra.mrb[0].mxu0 %v1469
      %v1537 = vpop.f32.mrb[0].mxu0
      %v1538 = vadd.f32 %v1465, %v1537
      %v1539 = vpop.f32.mrb[0].mxu0
      %1540 = vdwg.mxu0
      %v1541 = vlaneseq
      %v1542 = vshrl.u32 %v1541, 7
      %v1543 = vsub.s32 4, %v1542
      %v1544 = vrot.slane %v1121, %v1543
      %v1545 = vadd.f32 %v1538, %v1544
      %s1546 = scalar_lea.vmem %s462, 32
      %1547 = vst.msk [vmem:[%s1546] sm:$0xff] %vm886, %v1545
      %1548 = vset.pattern.permute.xlu0 5
      %1549 = vperm.xlu0 %1548, %v1043
      %v1550 = vpop.permute.xlu0 %1549
      %1552 = vrot.lane.b32.xlu0 %v962, 48
      %v1553 = vpop.permute.xlu0 %1552
      %v1554 = vsel %vm892, %v1553, 0
      %1556 = vmatprep.subr.mxu0 0.0
      %1557 = vmatpush1.xpose.msra.mxu0 %v1052
      %1558 = vmatprep.subr.mxu0 0.0
      %1559 = vmatpush1.xpose.msra.mxu0 0.0
      %1560 = vmatprep.subr.mxu0 0.0
      %1561 = vmatpush1.xpose.msra.mxu0 0.0
      %1562 = vmatprep.subr.mxu0 0.0
      %1563 = vmatpush1.xpose.msra.mxu0 0.0
      %1564 = vmatprep.subr.mxu0 0.0
      %1565 = vmatpush1.xpose.msra.mxu0 0.0
      %1566 = vmatprep.subr.mxu0 0.0
      %1567 = vmatpush1.xpose.msra.mxu0 0.0
      %1568 = vmatprep.subr.mxu0 0.0
      %1569 = vmatpush1.xpose.msra.mxu0 0.0
      %1570 = vmatprep.subr.mxu0 0.0
      %1571 = vmatpush1.xpose.msra.mxu0 0.0
      %1572 = vmatprep.subr.mxu0 0.0
      %1573 = vmatpush1.xpose.msra.mxu0 0.0
      %1574 = vmatprep.subr.mxu0 0.0
      %1575 = vmatpush1.xpose.msra.mxu0 0.0
      %1576 = vmatprep.subr.mxu0 0.0
      %1577 = vmatpush1.xpose.msra.mxu0 0.0
      %1578 = vmatprep.subr.mxu0 0.0
      %1579 = vmatpush1.xpose.msra.mxu0 0.0
      %1580 = vmatprep.subr.mxu0 0.0
      %1581 = vmatpush1.xpose.msra.mxu0 0.0
      %1582 = vmatprep.subr.mxu0 0.0
      %1583 = vmatpush1.xpose.msra.mxu0 0.0
      %1584 = vmatprep.subr.mxu0 0.0
      %1585 = vmatpush1.xpose.msra.mxu0 0.0
      %1586 = vmatprep.subr.mxu0 0.0
      %1587 = vmatpush1.xpose.msra.mxu0 0.0
      %1588 = vmatprep.subr.mxu0 0.0
      %1589 = vmatpush1.xpose.msra.mxu0 0.0
      %1590 = vmatprep.subr.mxu0 0.0
      %1591 = vmatpush1.xpose.msra.mxu0 0.0
      %1592 = vmatprep.subr.mxu0 0.0
      %1593 = vmatpush1.xpose.msra.mxu0 0.0
      %1594 = vmatprep.subr.mxu0 0.0
      %1595 = vmatpush1.xpose.msra.mxu0 0.0
      %1596 = vmatprep.subr.mxu0 0.0
      %1597 = vmatpush1.xpose.msra.mxu0 0.0
      %1598 = vmatprep.subr.mxu0 0.0
      %1599 = vmatpush1.xpose.msra.mxu0 0.0
      %1600 = vmatprep.subr.mxu0 0.0
      %1601 = vmatpush1.xpose.msra.mxu0 0.0
      %1602 = vmatprep.subr.mxu0 0.0
      %1603 = vmatpush1.xpose.msra.mxu0 0.0
      %1604 = vmatprep.subr.mxu0 0.0
      %1605 = vmatpush1.xpose.msra.mxu0 0.0
      %1606 = vmatprep.subr.mxu0 0.0
      %1607 = vmatpush1.xpose.msra.mxu0 0.0
      %1608 = vmatprep.subr.mxu0 0.0
      %1609 = vmatpush1.xpose.msra.mxu0 0.0
      %1610 = vmatprep.subr.mxu0 0.0
      %1611 = vmatpush1.xpose.msra.mxu0 0.0
      %1612 = vmatprep.subr.mxu0 0.0
      %1613 = vmatpush1.xpose.msra.mxu0 0.0
      %1614 = vmatprep.subr.mxu0 0.0
      %1615 = vmatpush1.xpose.msra.mxu0 0.0
      %1616 = vmatprep.subr.mxu0 0.0
      %1617 = vmatpush1.xpose.msra.mxu0 0.0
      %1618 = vmatprep.subr.mxu0 0.0
      %1619 = vmatpush1.xpose.msra.mxu0 0.0
      %1620 = vmatprep.mubr.f32.mxu0 0.0
      %1621 = vmatmul.mubr.f32.gmra.mrb[0].mxu0 %v1554
      %v1622 = vpop.f32.mrb[0].mxu0
      %v1623 = vadd.f32 %v1550, %v1622
      %v1624 = vpop.f32.mrb[0].mxu0
      %1625 = vdwg.mxu0
      %v1626 = vlaneseq
      %v1627 = vshrl.u32 %v1626, 7
      %v1628 = vsub.s32 5, %v1627
      %v1629 = vrot.slane %v1121, %v1628
      %v1630 = vadd.f32 %v1623, %v1629
      %s1631 = scalar_lea.vmem %s462, 40
      %1632 = vst.msk [vmem:[%s1631] sm:$0xff] %vm886, %v1630
      %1633 = vset.pattern.permute.xlu0 6
      %1634 = vperm.xlu0 %1633, %v1043
      %v1635 = vpop.permute.xlu0 %1634
      %1637 = vrot.lane.b32.xlu0 %v962, 32
      %v1638 = vpop.permute.xlu0 %1637
      %v1639 = vsel %vm892, %v1638, 0
      %1641 = vmatprep.subr.mxu0 0.0
      %1642 = vmatpush1.xpose.msra.mxu0 %v1052
      %1643 = vmatprep.subr.mxu0 0.0
      %1644 = vmatpush1.xpose.msra.mxu0 0.0
      %1645 = vmatprep.subr.mxu0 0.0
      %1646 = vmatpush1.xpose.msra.mxu0 0.0
      %1647 = vmatprep.subr.mxu0 0.0
      %1648 = vmatpush1.xpose.msra.mxu0 0.0
      %1649 = vmatprep.subr.mxu0 0.0
      %1650 = vmatpush1.xpose.msra.mxu0 0.0
      %1651 = vmatprep.subr.mxu0 0.0
      %1652 = vmatpush1.xpose.msra.mxu0 0.0
      %1653 = vmatprep.subr.mxu0 0.0
      %1654 = vmatpush1.xpose.msra.mxu0 0.0
      %1655 = vmatprep.subr.mxu0 0.0
      %1656 = vmatpush1.xpose.msra.mxu0 0.0
      %1657 = vmatprep.subr.mxu0 0.0
      %1658 = vmatpush1.xpose.msra.mxu0 0.0
      %1659 = vmatprep.subr.mxu0 0.0
      %1660 = vmatpush1.xpose.msra.mxu0 0.0
      %1661 = vmatprep.subr.mxu0 0.0
      %1662 = vmatpush1.xpose.msra.mxu0 0.0
      %1663 = vmatprep.subr.mxu0 0.0
      %1664 = vmatpush1.xpose.msra.mxu0 0.0
      %1665 = vmatprep.subr.mxu0 0.0
      %1666 = vmatpush1.xpose.msra.mxu0 0.0
      %1667 = vmatprep.subr.mxu0 0.0
      %1668 = vmatpush1.xpose.msra.mxu0 0.0
      %1669 = vmatprep.subr.mxu0 0.0
      %1670 = vmatpush1.xpose.msra.mxu0 0.0
      %1671 = vmatprep.subr.mxu0 0.0
      %1672 = vmatpush1.xpose.msra.mxu0 0.0
      %1673 = vmatprep.subr.mxu0 0.0
      %1674 = vmatpush1.xpose.msra.mxu0 0.0
      %1675 = vmatprep.subr.mxu0 0.0
      %1676 = vmatpush1.xpose.msra.mxu0 0.0
      %1677 = vmatprep.subr.mxu0 0.0
      %1678 = vmatpush1.xpose.msra.mxu0 0.0
      %1679 = vmatprep.subr.mxu0 0.0
      %1680 = vmatpush1.xpose.msra.mxu0 0.0
      %1681 = vmatprep.subr.mxu0 0.0
      %1682 = vmatpush1.xpose.msra.mxu0 0.0
      %1683 = vmatprep.subr.mxu0 0.0
      %1684 = vmatpush1.xpose.msra.mxu0 0.0
      %1685 = vmatprep.subr.mxu0 0.0
      %1686 = vmatpush1.xpose.msra.mxu0 0.0
      %1687 = vmatprep.subr.mxu0 0.0
      %1688 = vmatpush1.xpose.msra.mxu0 0.0
      %1689 = vmatprep.subr.mxu0 0.0
      %1690 = vmatpush1.xpose.msra.mxu0 0.0
      %1691 = vmatprep.subr.mxu0 0.0
      %1692 = vmatpush1.xpose.msra.mxu0 0.0
      %1693 = vmatprep.subr.mxu0 0.0
      %1694 = vmatpush1.xpose.msra.mxu0 0.0
      %1695 = vmatprep.subr.mxu0 0.0
      %1696 = vmatpush1.xpose.msra.mxu0 0.0
      %1697 = vmatprep.subr.mxu0 0.0
      %1698 = vmatpush1.xpose.msra.mxu0 0.0
      %1699 = vmatprep.subr.mxu0 0.0
      %1700 = vmatpush1.xpose.msra.mxu0 0.0
      %1701 = vmatprep.subr.mxu0 0.0
      %1702 = vmatpush1.xpose.msra.mxu0 0.0
      %1703 = vmatprep.subr.mxu0 0.0
      %1704 = vmatpush1.xpose.msra.mxu0 0.0
      %1705 = vmatprep.mubr.f32.mxu0 0.0
      %1706 = vmatmul.mubr.f32.gmra.mrb[0].mxu0 %v1639
      %v1707 = vpop.f32.mrb[0].mxu0
      %v1708 = vadd.f32 %v1635, %v1707
      %v1709 = vpop.f32.mrb[0].mxu0
      %1710 = vdwg.mxu0
      %v1711 = vlaneseq
      %v1712 = vshrl.u32 %v1711, 7
      %v1713 = vsub.s32 6, %v1712
      %v1714 = vrot.slane %v1121, %v1713
      %v1715 = vadd.f32 %v1708, %v1714
      %s1716 = scalar_lea.vmem %s462, 48
      %1717 = vst.msk [vmem:[%s1716] sm:$0xff] %vm886, %v1715
      %1718 = vset.pattern.permute.xlu0 7
      %1719 = vperm.xlu0 %1718, %v1043
      %v1720 = vpop.permute.xlu0 %1719
      %1722 = vrot.lane.b32.xlu0 %v962, 16
      %v1723 = vpop.permute.xlu0 %1722
      %v1724 = vsel %vm892, %v1723, 0
      %1726 = vmatprep.subr.mxu0 0.0
      %1727 = vmatpush1.xpose.msra.mxu0 %v1052
      %1728 = vmatprep.subr.mxu0 0.0
      %1729 = vmatpush1.xpose.msra.mxu0 0.0
      %1730 = vmatprep.subr.mxu0 0.0
      %1731 = vmatpush1.xpose.msra.mxu0 0.0
      %1732 = vmatprep.subr.mxu0 0.0
      %1733 = vmatpush1.xpose.msra.mxu0 0.0
      %1734 = vmatprep.subr.mxu0 0.0
      %1735 = vmatpush1.xpose.msra.mxu0 0.0
      %1736 = vmatprep.subr.mxu0 0.0
      %1737 = vmatpush1.xpose.msra.mxu0 0.0
      %1738 = vmatprep.subr.mxu0 0.0
      %1739 = vmatpush1.xpose.msra.mxu0 0.0
      %1740 = vmatprep.subr.mxu0 0.0
      %1741 = vmatpush1.xpose.msra.mxu0 0.0
      %1742 = vmatprep.subr.mxu0 0.0
      %1743 = vmatpush1.xpose.msra.mxu0 0.0
      %1744 = vmatprep.subr.mxu0 0.0
      %1745 = vmatpush1.xpose.msra.mxu0 0.0
      %1746 = vmatprep.subr.mxu0 0.0
      %1747 = vmatpush1.xpose.msra.mxu0 0.0
      %1748 = vmatprep.subr.mxu0 0.0
      %1749 = vmatpush1.xpose.msra.mxu0 0.0
      %1750 = vmatprep.subr.mxu0 0.0
      %1751 = vmatpush1.xpose.msra.mxu0 0.0
      %1752 = vmatprep.subr.mxu0 0.0
      %1753 = vmatpush1.xpose.msra.mxu0 0.0
      %1754 = vmatprep.subr.mxu0 0.0
      %1755 = vmatpush1.xpose.msra.mxu0 0.0
      %1756 = vmatprep.subr.mxu0 0.0
      %1757 = vmatpush1.xpose.msra.mxu0 0.0
      %1758 = vmatprep.subr.mxu0 0.0
      %1759 = vmatpush1.xpose.msra.mxu0 0.0
      %1760 = vmatprep.subr.mxu0 0.0
      %1761 = vmatpush1.xpose.msra.mxu0 0.0
      %1762 = vmatprep.subr.mxu0 0.0
      %1763 = vmatpush1.xpose.msra.mxu0 0.0
      %1764 = vmatprep.subr.mxu0 0.0
      %1765 = vmatpush1.xpose.msra.mxu0 0.0
      %1766 = vmatprep.subr.mxu0 0.0
      %1767 = vmatpush1.xpose.msra.mxu0 0.0
      %1768 = vmatprep.subr.mxu0 0.0
      %1769 = vmatpush1.xpose.msra.mxu0 0.0
      %1770 = vmatprep.subr.mxu0 0.0
      %1771 = vmatpush1.xpose.msra.mxu0 0.0
      %1772 = vmatprep.subr.mxu0 0.0
      %1773 = vmatpush1.xpose.msra.mxu0 0.0
      %1774 = vmatprep.subr.mxu0 0.0
      %1775 = vmatpush1.xpose.msra.mxu0 0.0
      %1776 = vmatprep.subr.mxu0 0.0
      %1777 = vmatpush1.xpose.msra.mxu0 0.0
      %1778 = vmatprep.subr.mxu0 0.0
      %1779 = vmatpush1.xpose.msra.mxu0 0.0
      %1780 = vmatprep.subr.mxu0 0.0
      %1781 = vmatpush1.xpose.msra.mxu0 0.0
      %1782 = vmatprep.subr.mxu0 0.0
      %1783 = vmatpush1.xpose.msra.mxu0 0.0
      %1784 = vmatprep.subr.mxu0 0.0
      %1785 = vmatpush1.xpose.msra.mxu0 0.0
      %1786 = vmatprep.subr.mxu0 0.0
      %1787 = vmatpush1.xpose.msra.mxu0 0.0
      %1788 = vmatprep.subr.mxu0 0.0
      %1789 = vmatpush1.xpose.msra.mxu0 0.0
      %1790 = vmatprep.mubr.f32.mxu0 0.0
      %1791 = vmatmul.mubr.f32.gmra.mrb[0].mxu0 %v1724
      %v1792 = vpop.f32.mrb[0].mxu0
      %v1793 = vadd.f32 %v1720, %v1792
      %v1794 = vpop.f32.mrb[0].mxu0
      %1795 = vdwg.mxu0
      %v1796 = vlaneseq
      %v1797 = vshrl.u32 %v1796, 7
      %v1798 = vsub.s32 7, %v1797
      %v1799 = vrot.slane %v1121, %v1798
      %v1800 = vadd.f32 %v1793, %v1799
      %s1801 = scalar_lea.vmem %s462, 56
      %1802 = vst.msk [vmem:[%s1801] sm:$0xff] %vm886, %v1800
      %p1803 = scmp.lt.s32.totalorder %s25, 3
      %s1804 = scalar_select %p1803, %s25, 3
      %s1805 = smul.addr %s1804, 8
      %s1806 = scalar_lea.vmem %s12, %s1805
      %p1807 = scmp.lt.s32.totalorder %s25, 3
      %s1808 = scalar_select %p1807, %s25, 3
      %s1809 = smul.addr %s1808, 8
      %s1810 = smul.addr %s1809, 8
      %s1811 = scalar_lea.vmem %s13, %s1810
      // Predicated region
      $region69: #{unk_obfuscator_forward.1} parent=67 // pred_check
        %p1812 = pneg %p305
      $region70: #{unk_obfuscator_forward.1} parent=67 // pred_check_branch
        %1814 = sbr.rel (%p1812) target = $region72
      $region71: #{unk_obfuscator_forward.1} parent=67 // pred_region
        _
      $region72: #{unk_obfuscator_forward.1} parent=67 // pred_fallthru
        _
      // Predicated region
      $region73: #{unk_obfuscator_forward.1} parent=67 // pred_check
        %p1815 = pneg %p331
      $region74: #{unk_obfuscator_forward.1} parent=67 // pred_check_branch
        %1817 = sbr.rel (%p1815) target = $region76
      $region75: #{unk_obfuscator_forward.1} parent=67 // pred_region
        _
      $region76: #{unk_obfuscator_forward.1} parent=67 // pred_fallthru
        _
    $region68: #{unk_obfuscator_forward.1} parent=5 // pred_fallthru
      _
    %p1818 = scmp.le.s32.totalorder 2, %s20
    // Predicated region
    $region77: #{unk_obfuscator_forward.1} parent=5 // pred_check
      %p1819 = pneg %p1818
    $region78: #{unk_obfuscator_forward.1} parent=5 // pred_check_branch
      %1821 = sbr.rel (%p1819) target = $region80
    $region79: #{unk_obfuscator_forward.1} parent=5 // pred_region
      %s1822 = ssub.s32 %s20, 2
      // Predicated region
      $region81: #{unk_obfuscator_forward.1} parent=79 // pred_check
        %p1823 = pneg %p311
      $region82: #{unk_obfuscator_forward.1} parent=79 // pred_check_branch
        %1825 = sbr.rel (%p1823) target = $region84
      $region83: #{unk_obfuscator_forward.1} parent=79 // pred_region
        %p1826 = scmp.lt.s32.totalorder %s26, 3
        %s1827 = scalar_select %p1826, %s26, 3
        %s1828 = smul.addr %s1827, 8
        %s1829 = scalar_lea.vmem %s12, %s1828
      $region84: #{unk_obfuscator_forward.1} parent=79 // pred_fallthru
        _
      // Predicated region
      $region85: #{unk_obfuscator_forward.1} parent=79 // pred_check
        %p1830 = pneg %p337
      $region86: #{unk_obfuscator_forward.1} parent=79 // pred_check_branch
        %1832 = sbr.rel (%p1830) target = $region88
      $region87: #{unk_obfuscator_forward.1} parent=79 // pred_region
        %p1833 = scmp.lt.s32.totalorder %s26, 3
        %s1834 = scalar_select %p1833, %s26, 3
        %s1835 = smul.addr %s1834, 8
        %s1836 = smul.addr %s1835, 8
        %s1837 = scalar_lea.vmem %s13, %s1836
      $region88: #{unk_obfuscator_forward.1} parent=79 // pred_fallthru
        _
    $region80: #{unk_obfuscator_forward.1} parent=5 // pred_fallthru
      _
  $region6: #{unk_obfuscator_forward.1} parent=0 // loop_footer
    %s24 = sadd.s32 1, %s20
  $region7: #{unk_obfuscator_forward.1} parent=0 // loop_footer_branch
    %19 = sbr.rel target = $region3
  $region8: #{unk_obfuscator_forward.1} parent=0 // loop_exit
    _

</llo_original>
